<compile_context>
chip_gen: v5e
topology: v5e:2x2
jax: 0.10.0
libtpu: 0.0.40
codegen_flags: <defaults>
</compile_context>

<pallas_src>
MODEL_MLP_HIDDEN_LAYERS = 2
MODEL_MLP_HIDDEN_LAYER_SIZE = 128
MODEL_SIZE = 32

import functools

import jax
import jax.numpy as jnp
from jax.experimental import pallas as pl
from jax.experimental.pallas import tpu as pltpu

_SQRT_HALF = 0.7071067811865476       # 1/sqrt(2)
_SQRT_2_OVER_PI = 0.7978845608028654  # sqrt(2/pi)


def _gelu(x, tanh_approx):
    if tanh_approx:
        # torch.nn.GELU(approximate='tanh') formulation; exp/tanh go to the EUP slot.
        return 0.5 * x * (1.0 + jnp.tanh(_SQRT_2_OVER_PI * (x + 0.044715 * (x * x * x))))
    # torch.nn.GELU() default: exact erf-based GELU (VPU polynomial).
    return 0.5 * x * (1.0 + jax.lax.erf(x * _SQRT_HALF))


def mlp_kernel(x_ref, w1_ref, b1_ref, w2_ref, b2_ref, w3_ref, b3_ref, o_ref,
               *, mxu_bf16, gelu_tanh):
    # x_ref: (TMf, Df) lane-dense folded rows; weights are block-diagonal (in*fold,
    # out*fold) so the folded layout flows through all three layers unchanged.
    mxu_dtype = jnp.bfloat16 if mxu_bf16 else jnp.float32

    h = x_ref[...].astype(mxu_dtype)

    # Layer 1: (block-diag) Linear(D -> H) + GELU.  f32 accumulation on the MXU.
    h = jnp.dot(h, w1_ref[...], preferred_element_type=jnp.float32) + b1_ref[...]
    h = _gelu(h, gelu_tanh)

    # Layer 2: (block-diag) Linear(H -> H) + GELU.
    h = jnp.dot(h.astype(mxu_dtype), w2_ref[...],
                preferred_element_type=jnp.float32) + b2_ref[...]
    h = _gelu(h, gelu_tanh)

    # Output layer: (block-diag) Linear(H -> D), no activation.
    h = jnp.dot(h.astype(mxu_dtype), w3_ref[...],
                preferred_element_type=jnp.float32) + b3_ref[...]

    # Lane-dense (Df = 128) unmasked store.
    o_ref[...] = h.astype(o_ref.dtype)


def _round_up(v, m):
    return ((v + m - 1) // m) * m


@functools.partial(jax.jit, static_argnames=("tile_m", "mxu_bf16", "gelu_tanh"))
def mlp_pallas(x, params, tile_m=2048, mxu_bf16=False, gelu_tanh=False):
    """x: [batch, seq, D].  params: weights stored (in, out), biases (1, out).

    tile_m counts *unfolded* rows; 2048 rows = 512 folded rows amortizes the grid-step
    overhead to <10% while keeping per-step VMEM well under every generation's scoped
    default (so no vmem_limit_bytes is set — deliberately, per the v7x guidance).
    mxu_bf16 / gelu_tanh are opt-in performance flags that change numerics slightly.
    """
    B, S, D = x.shape
    rows = B * S

    w1, b1 = params["w1"], params["b1"]
    w2, b2 = params["w2"], params["b2"]
    w3, b3 = params["w3"], params["b3"]
    H = w1.shape[1]

    # ---- Lane fold: pack `fold` consecutive rows into one 128-lane row. ----
    fold = 128 // D if (D < 128 and 128 % D == 0) else 1
    Df, Hf = D * fold, H * fold

    rows_p = _round_up(rows, 8 * fold)   # fold alignment + 8-sublane alignment (folded)
    x2 = x.reshape(rows, D)
    if rows_p != rows:
        x2 = jnp.pad(x2, ((0, rows_p - rows), (0, 0)))
    Mf = rows_p // fold
    xf = x2.reshape(Mf, Df)              # zero-copy row-major fold (pure metadata)

    mxu_dtype = jnp.bfloat16 if mxu_bf16 else w1.dtype

    def fold_w(w):  # (in, out) -> block-diagonal (in*fold, out*fold)
        wf = w if fold == 1 else jnp.kron(jnp.eye(fold, dtype=w.dtype), w)
        return wf.astype(mxu_dtype)

    def fold_b(b):  # (1, out) -> (1, out*fold); bias add stays in f32
        bf = b if fold == 1 else jnp.tile(b, (1, fold))
        return bf.astype(jnp.float32)

    w1f, b1f = fold_w(w1), fold_b(b1)
    w2f, b2f = fold_w(w2), fold_b(b2)
    w3f, b3f = fold_w(w3), fold_b(b3)

    # ---- Row tiling over folded rows. ----
    tile_f = max(8, tile_m // fold)
    # Guarantee >= 2 grid steps whenever there is enough work so the "parallel" axis
    # can shard across both TensorCores on v7x (costs nothing on single-TC v5e/v6e).
    tile_f = min(tile_f, max(8, _round_up(pl.cdiv(Mf, 2), 8)))
    tile_f = min(tile_f, Mf)
    grid = (pl.cdiv(Mf, tile_f),)

    # Invariant operands: whole folded weight stack pinned in VMEM (~1.5 MiB f32,
    # ~0.75 MiB bf16) -> no per-step DMA / double buffering for weights.
    resident = pl.BlockSpec(memory_space=pltpu.MemorySpace.VMEM)

    # Advisory cost estimate; folded matmul shapes reflect the actual MXU work.
    flops = 2 * Mf * (Df * Hf + Hf * Hf + Hf * Df)
    transcendentals = 2 * Mf * Hf
    w_bytes = (Df * Hf + Hf * Hf + Hf * Df) * jnp.dtype(mxu_dtype).itemsize
    bytes_accessed = 2 * Mf * Df * jnp.dtype(x.dtype).itemsize + w_bytes + 4 * (2 * Hf + Df)

    kernel = functools.partial(mlp_kernel, mxu_bf16=mxu_bf16, gelu_tanh=gelu_tanh)

    # NOTE: if mxu_bf16 is enabled, x / out could additionally be streamed in bf16 to
    # halve HBM traffic (mainly helps v5e); kept f32 here to preserve I/O dtype.
    outf = pl.pallas_call(
        kernel,
        out_shape=jax.ShapeDtypeStruct((Mf, Df), x.dtype),
        grid_spec=pltpu.PrefetchScalarGridSpec(
            num_scalar_prefetch=0,
            grid=grid,
            in_specs=[
                pl.BlockSpec((tile_f, Df), lambda i: (i, 0)),  # folded x tile (pipelined)
                resident, resident,                            # layer 1 W, b
                resident, resident,                            # layer 2 W, b
                resident, resident,                            # output layer W, b
            ],
            out_specs=pl.BlockSpec((tile_f, Df), lambda i: (i, 0)),
        ),
        compiler_params=pltpu.CompilerParams(
            dimension_semantics=("parallel",),
        ),
        cost_estimate=pl.CostEstimate(
            flops=flops,
            transcendentals=transcendentals,
            bytes_accessed=bytes_accessed,
        ),
    )(xf, w1f, b1f, w2f, b2f, w3f, b3f)

    out2 = outf.reshape(rows_p, D)[:rows]   # zero-copy unfold, drop padded rows
    return out2.reshape(B, S, D)


def init_params(key, model_size, hidden_size):
    """Deterministic synthetic init mimicking torch.nn.Linear (uniform +/-1/sqrt(fan_in)).
    Weights stored as (in_features, out_features) so the kernel computes x @ W + b."""
    ks = jax.random.split(key, 6)

    def lin(kw, kb, fan_in, fan_out):
        bound = 1.0 / jnp.sqrt(fan_in)
        w = jax.random.uniform(kw, (fan_in, fan_out), jnp.float32, -bound, bound)
        b = jax.random.uniform(kb, (1, fan_out), jnp.float32, -bound, bound)
        return w, b

    w1, b1 = lin(ks[0], ks[1], model_size, hidden_size)
    w2, b2 = lin(ks[2], ks[3], hidden_size, hidden_size)
    w3, b3 = lin(ks[4], ks[5], hidden_size, model_size)
    return {"w1": w1, "b1": b1, "w2": w2, "b2": b2, "w3": w3, "b3": b3}


def mlp_ref(x, params):
    """Pure-JAX reference of the PyTorch forward (exact erf GELU, f32)."""
    h = x
    h = jax.nn.gelu(h @ params["w1"] + params["b1"], approximate=False)
    h = jax.nn.gelu(h @ params["w2"] + params["b2"], approximate=False)
    h = h @ params["w3"] + params["b3"]
    return h


if __name__ == "__main__":
    key = jax.random.PRNGKey(0)
    k_x, k_p = jax.random.split(key)

    batch, seq = 2, 8
    x = jax.random.normal(k_x, (batch, seq, MODEL_SIZE), jnp.float32)
    params = init_params(k_p, MODEL_SIZE, MODEL_MLP_HIDDEN_LAYER_SIZE)
    ref = mlp_ref(x, params)

    # Default path: exact erf GELU + f32 matmuls -> matches the PyTorch module tightly.
    out = jax.block_until_ready(mlp_pallas(x, params))
    assert out.shape == (batch, seq, MODEL_SIZE)
    assert jnp.allclose(out, ref, atol=1e-5, rtol=1e-5), "mismatch vs reference"

    # Ragged row count (not a multiple of the lane fold / row tile) exercises padding.
    x_odd = jax.random.normal(k_x, (3, 7, MODEL_SIZE), jnp.float32)
    out_odd = jax.block_until_ready(mlp_pallas(x_odd, params))
    assert jnp.allclose(out_odd, mlp_ref(x_odd, params), atol=1e-5, rtol=1e-5), \
        "mismatch vs reference (ragged rows)"
    assert jnp.all(jnp.isfinite(out_odd)), "padding leaked NaN/Inf into valid rows"

    # Multi-step grid (>=2 'parallel' steps) with the same tolerances.
    x_big = jax.random.normal(k_x, (4, 37, MODEL_SIZE), jnp.float32)
    out_big = jax.block_until_ready(mlp_pallas(x_big, params))
    assert jnp.allclose(out_big, mlp_ref(x_big, params), atol=1e-5, rtol=1e-5), \
        "mismatch vs reference (multi-step grid)"

    # Opt-in fast path: bf16 MXU operands (f32 accumulation) + tanh-approx GELU.
    out_fast = jax.block_until_ready(mlp_pallas(x, params, mxu_bf16=True, gelu_tanh=True))
    assert jnp.allclose(out_fast, ref, atol=3e-2, rtol=3e-2), "fast path out of tolerance"

    print("KERNEL_OK")
</pallas_src>

<mosaic_0001>
module attributes {stable_mosaic.version = 11 : i64} {
  func.func @mlp_kernel(%arg0: i32, %arg1: memref<8x128xf32, #tpu.memory_space<vmem>>, %arg2: memref<128x512xf32, #tpu.memory_space<vmem>>, %arg3: memref<1x512xf32, #tpu.memory_space<vmem>>, %arg4: memref<512x512xf32, #tpu.memory_space<vmem>>, %arg5: memref<1x512xf32, #tpu.memory_space<vmem>>, %arg6: memref<512x128xf32, #tpu.memory_space<vmem>>, %arg7: memref<1x128xf32, #tpu.memory_space<vmem>>, %arg8: memref<8x128xf32, #tpu.memory_space<vmem>>) attributes {dimension_semantics = [#tpu.dimension_semantics<parallel>], iteration_bounds = array<i64: 1>, scalar_prefetch = 0 : i64, scratch_operands = 0 : i64, tpu.core_type = #tpu.core_type<tc>, window_params = [{transform_indices = @transform_0, window_bounds = array<i64: 8, 128>}, {pipeline_mode = #tpu.pipeline_mode<synchronous>, transform_indices = @transform_1, window_bounds = array<i64: 128, 512>}, {pipeline_mode = #tpu.pipeline_mode<synchronous>, transform_indices = @transform_2, window_bounds = array<i64: 1, 512>}, {pipeline_mode = #tpu.pipeline_mode<synchronous>, transform_indices = @transform_3, window_bounds = array<i64: 512, 512>}, {pipeline_mode = #tpu.pipeline_mode<synchronous>, transform_indices = @transform_4, window_bounds = array<i64: 1, 512>}, {pipeline_mode = #tpu.pipeline_mode<synchronous>, transform_indices = @transform_5, window_bounds = array<i64: 512, 128>}, {pipeline_mode = #tpu.pipeline_mode<synchronous>, transform_indices = @transform_6, window_bounds = array<i64: 1, 128>}, {transform_indices = @transform_7, window_bounds = array<i64: 8, 128>}]} {
    %c0 = arith.constant 0 : index
    %c0_0 = arith.constant 0 : index
    %0 = vector.load %arg1[%c0, %c0_0] : memref<8x128xf32, #tpu.memory_space<vmem>>, vector<8x128xf32>
    %c0_1 = arith.constant 0 : index
    %c0_2 = arith.constant 0 : index
    %1 = vector.load %arg2[%c0_1, %c0_2] : memref<128x512xf32, #tpu.memory_space<vmem>>, vector<128x512xf32>
    %cst = arith.constant dense<0.000000e+00> : vector<8x512xf32>
    %2 = tpu.matmul %0, %1, %cst {dimension_numbers = #tpu.dot_dimension_numbers<[1], [0], [0], [1], [0, 0, 1, 1], [], []>} : vector<8x128xf32>, vector<128x512xf32>, vector<8x512xf32> -> vector<8x512xf32>
    %c0_3 = arith.constant 0 : index
    %c0_4 = arith.constant 0 : index
    %3 = vector.load %arg3[%c0_3, %c0_4] : memref<1x512xf32, #tpu.memory_space<vmem>>, vector<1x512xf32>
    %4 = vector.broadcast %3 : vector<1x512xf32> to vector<8x512xf32>
    %5 = arith.addf %2, %4 : vector<8x512xf32>
    %cst_5 = arith.constant 5.000000e-01 : f32
    %6 = vector.broadcast %cst_5 : f32 to vector<8x512xf32>
    %7 = arith.mulf %6, %5 : vector<8x512xf32>
    %cst_6 = arith.constant 0.707106769 : f32
    %8 = vector.broadcast %cst_6 : f32 to vector<8x512xf32>
    %9 = arith.mulf %5, %8 : vector<8x512xf32>
    %10 = math.erf %9 : vector<8x512xf32>
    %cst_7 = arith.constant 1.000000e+00 : f32
    %11 = vector.broadcast %cst_7 : f32 to vector<8x512xf32>
    %12 = arith.addf %11, %10 : vector<8x512xf32>
    %13 = arith.mulf %7, %12 : vector<8x512xf32>
    %c0_8 = arith.constant 0 : index
    %c0_9 = arith.constant 0 : index
    %14 = vector.load %arg4[%c0_8, %c0_9] : memref<512x512xf32, #tpu.memory_space<vmem>>, vector<512x512xf32>
    %cst_10 = arith.constant dense<0.000000e+00> : vector<8x512xf32>
    %15 = tpu.matmul %13, %14, %cst_10 {dimension_numbers = #tpu.dot_dimension_numbers<[1], [0], [0], [1], [0, 0, 1, 1], [], []>} : vector<8x512xf32>, vector<512x512xf32>, vector<8x512xf32> -> vector<8x512xf32>
    %c0_11 = arith.constant 0 : index
    %c0_12 = arith.constant 0 : index
    %16 = vector.load %arg5[%c0_11, %c0_12] : memref<1x512xf32, #tpu.memory_space<vmem>>, vector<1x512xf32>
    %17 = vector.broadcast %16 : vector<1x512xf32> to vector<8x512xf32>
    %18 = arith.addf %15, %17 : vector<8x512xf32>
    %cst_13 = arith.constant 5.000000e-01 : f32
    %19 = vector.broadcast %cst_13 : f32 to vector<8x512xf32>
    %20 = arith.mulf %19, %18 : vector<8x512xf32>
    %cst_14 = arith.constant 0.707106769 : f32
    %21 = vector.broadcast %cst_14 : f32 to vector<8x512xf32>
    %22 = arith.mulf %18, %21 : vector<8x512xf32>
    %23 = math.erf %22 : vector<8x512xf32>
    %cst_15 = arith.constant 1.000000e+00 : f32
    %24 = vector.broadcast %cst_15 : f32 to vector<8x512xf32>
    %25 = arith.addf %24, %23 : vector<8x512xf32>
    %26 = arith.mulf %20, %25 : vector<8x512xf32>
    %c0_16 = arith.constant 0 : index
    %c0_17 = arith.constant 0 : index
    %27 = vector.load %arg6[%c0_16, %c0_17] : memref<512x128xf32, #tpu.memory_space<vmem>>, vector<512x128xf32>
    %cst_18 = arith.constant dense<0.000000e+00> : vector<8x128xf32>
    %28 = tpu.matmul %26, %27, %cst_18 {dimension_numbers = #tpu.dot_dimension_numbers<[1], [0], [0], [1], [0, 0, 1, 1], [], []>} : vector<8x512xf32>, vector<512x128xf32>, vector<8x128xf32> -> vector<8x128xf32>
    %c0_19 = arith.constant 0 : index
    %c0_20 = arith.constant 0 : index
    %29 = vector.load %arg7[%c0_19, %c0_20] : memref<1x128xf32, #tpu.memory_space<vmem>>, vector<1x128xf32>
    %30 = vector.broadcast %29 : vector<1x128xf32> to vector<8x128xf32>
    %31 = arith.addf %28, %30 : vector<8x128xf32>
    %c0_21 = arith.constant 0 : index
    %c0_22 = arith.constant 0 : index
    %32 = vector.load %arg8[%c0_21, %c0_22] : memref<8x128xf32, #tpu.memory_space<vmem>>, vector<8x128xf32>
    tpu.vector_store %arg8[%c0_21, %c0_22], %31 {strides = array<i32>} : memref<8x128xf32, #tpu.memory_space<vmem>>, vector<8x128xf32>,
    return
  }
  func.func @transform_0(%arg0: i32) -> (i32, i32) {
    %c0_i32 = arith.constant 0 : i32
    %c0_i32_0 = arith.constant 0 : i32
    return %arg0, %c0_i32 : i32, i32
  }
  func.func @transform_1(%arg0: i32) -> (i32, i32) {
    %c0_i32 = arith.constant 0 : i32
    %c0_i32_0 = arith.constant 0 : i32
    %c0_i32_1 = arith.constant 0 : i32
    return %c0_i32, %c0_i32_0 : i32, i32
  }
  func.func @transform_2(%arg0: i32) -> (i32, i32) {
    %c0_i32 = arith.constant 0 : i32
    %c0_i32_0 = arith.constant 0 : i32
    %c0_i32_1 = arith.constant 0 : i32
    return %c0_i32, %c0_i32_0 : i32, i32
  }
  func.func @transform_3(%arg0: i32) -> (i32, i32) {
    %c0_i32 = arith.constant 0 : i32
    %c0_i32_0 = arith.constant 0 : i32
    %c0_i32_1 = arith.constant 0 : i32
    return %c0_i32, %c0_i32_0 : i32, i32
  }
  func.func @transform_4(%arg0: i32) -> (i32, i32) {
    %c0_i32 = arith.constant 0 : i32
    %c0_i32_0 = arith.constant 0 : i32
    %c0_i32_1 = arith.constant 0 : i32
    return %c0_i32, %c0_i32_0 : i32, i32
  }
  func.func @transform_5(%arg0: i32) -> (i32, i32) {
    %c0_i32 = arith.constant 0 : i32
    %c0_i32_0 = arith.constant 0 : i32
    %c0_i32_1 = arith.constant 0 : i32
    return %c0_i32, %c0_i32_0 : i32, i32
  }
  func.func @transform_6(%arg0: i32) -> (i32, i32) {
    %c0_i32 = arith.constant 0 : i32
    %c0_i32_0 = arith.constant 0 : i32
    %c0_i32_1 = arith.constant 0 : i32
    return %c0_i32, %c0_i32_0 : i32, i32
  }
  func.func @transform_7(%arg0: i32) -> (i32, i32) {
    %c0_i32 = arith.constant 0 : i32
    %c0_i32_0 = arith.constant 0 : i32
    return %arg0, %c0_i32 : i32, i32
  }
}

</mosaic_0001>

<llo_original>
// kernel: mlp_pallas.1
$region0: #{mlp_pallas.1}
  #allocation0 [shape = 'u32[]', space=smem, size = 0x4, offset = 0x4, fixed_abs, tag = 'smem constant byte address 0x4 - core index']
  #allocation1 [shape = 'u32[72,128]{1,0:T(1,128)}', space=vmem, size = 0x9000, scoped, tag = 'internal scratch']
  %s0 = inlined_call_operand.vmem [shape: f32[8,128], index: 0, kind: input, shape index: {}]
  %s1 = inlined_call_operand.vmem [shape: f32[128,512], index: 1, kind: input, shape index: {}]
  %s2 = inlined_call_operand.vmem [shape: f32[1,512], index: 2, kind: input, shape index: {}]
  %s3 = inlined_call_operand.vmem [shape: f32[512,512], index: 3, kind: input, shape index: {}]
  %s4 = inlined_call_operand.vmem [shape: f32[1,512], index: 4, kind: input, shape index: {}]
  %s5 = inlined_call_operand.vmem [shape: f32[512,128], index: 5, kind: input, shape index: {}]
  %s6 = inlined_call_operand.vmem [shape: f32[1,128], index: 6, kind: input, shape index: {}]
  %s7 = inlined_call_operand.vmem [shape: f32[8,128], index: 7, kind: output, shape index: {}]
  %s8 = sld [smem:[#allocation0]]
  $region38: #{mlp_pallas.1} parent=0
    _
  %s10 = ssub.s32 1, %s8
  %s11 = scalar_select 0, %s10, %s8
  // Predicated region
  $region2: #{mlp_pallas.1} parent=0 // pred_check
    _
  $region3: #{mlp_pallas.1} parent=0 // pred_check_branch
    %13 = sbr.rel (0) target = $region5
  $region4: #{mlp_pallas.1} parent=0 // pred_region
    _
  $region5: #{mlp_pallas.1} parent=0 // pred_fallthru
    _
  // Predicated region
  $region6: #{mlp_pallas.1} parent=0 // pred_check
    _
  $region7: #{mlp_pallas.1} parent=0 // pred_check_branch
    %15 = sbr.rel (0) target = $region9
  $region8: #{mlp_pallas.1} parent=0 // pred_region
    _
  $region9: #{mlp_pallas.1} parent=0 // pred_fallthru
    _
  // Predicated region
  $region10: #{mlp_pallas.1} parent=0 // pred_check
    _
  $region11: #{mlp_pallas.1} parent=0 // pred_check_branch
    %17 = sbr.rel (0) target = $region13
  $region12: #{mlp_pallas.1} parent=0 // pred_region
    _
  $region13: #{mlp_pallas.1} parent=0 // pred_fallthru
    _
  // Predicated region
  $region14: #{mlp_pallas.1} parent=0 // pred_check
    _
  $region15: #{mlp_pallas.1} parent=0 // pred_check_branch
    %19 = sbr.rel (0) target = $region17
  $region16: #{mlp_pallas.1} parent=0 // pred_region
    _
  $region17: #{mlp_pallas.1} parent=0 // pred_fallthru
    _
  // Predicated region
  $region18: #{mlp_pallas.1} parent=0 // pred_check
    _
  $region19: #{mlp_pallas.1} parent=0 // pred_check_branch
    %21 = sbr.rel (0) target = $region21
  $region20: #{mlp_pallas.1} parent=0 // pred_region
    _
  $region21: #{mlp_pallas.1} parent=0 // pred_fallthru
    _
  // Predicated region
  $region22: #{mlp_pallas.1} parent=0 // pred_check
    _
  $region23: #{mlp_pallas.1} parent=0 // pred_check_branch
    %23 = sbr.rel (0) target = $region25
  $region24: #{mlp_pallas.1} parent=0 // pred_region
    _
  $region25: #{mlp_pallas.1} parent=0 // pred_fallthru
    _
  // Predicated region
  $region26: #{mlp_pallas.1} parent=0 // pred_check
    _
  $region27: #{mlp_pallas.1} parent=0 // pred_check_branch
    %25 = sbr.rel (0) target = $region29
  $region28: #{mlp_pallas.1} parent=0 // pred_region
    _
  $region29: #{mlp_pallas.1} parent=0 // pred_fallthru
    _
  %v26 = vld [vmem:[%s0] sm:$0xff]
  %v27 = vld [vmem:[%s1] sm:$0xff]
  %v28 = vld [vmem:[%s1 + $0x8] sm:$0xff]
  %v29 = vld [vmem:[%s1 + $0x10] sm:$0xff]
  %v30 = vld [vmem:[%s1 + $0x18] sm:$0xff]
  %v31 = vld [vmem:[%s1 + $0x20] sm:$0xff]
  %v32 = vld [vmem:[%s1 + $0x28] sm:$0xff]
  %v33 = vld [vmem:[%s1 + $0x30] sm:$0xff]
  %v34 = vld [vmem:[%s1 + $0x38] sm:$0xff]
  %v35 = vld [vmem:[%s1 + $0x40] sm:$0xff]
  %v36 = vld [vmem:[%s1 + $0x48] sm:$0xff]
  %v37 = vld [vmem:[%s1 + $0x50] sm:$0xff]
  %v38 = vld [vmem:[%s1 + $0x58] sm:$0xff]
  %v39 = vld [vmem:[%s1 + $0x60] sm:$0xff]
  %v40 = vld [vmem:[%s1 + $0x68] sm:$0xff]
  %v41 = vld [vmem:[%s1 + $0x70] sm:$0xff]
  %v42 = vld [vmem:[%s1 + $0x78] sm:$0xff]
  %v43 = vld [vmem:[%s1 + $0x80] sm:$0xff]
  %v44 = vld [vmem:[%s1 + $0x88] sm:$0xff]
  %v45 = vld [vmem:[%s1 + $0x90] sm:$0xff]
  %v46 = vld [vmem:[%s1 + $0x98] sm:$0xff]
  %v47 = vld [vmem:[%s1 + $0xa0] sm:$0xff]
  %v48 = vld [vmem:[%s1 + $0xa8] sm:$0xff]
  %v49 = vld [vmem:[%s1 + $0xb0] sm:$0xff]
  %v50 = vld [vmem:[%s1 + $0xb8] sm:$0xff]
  %v51 = vld [vmem:[%s1 + $0xc0] sm:$0xff]
  %v52 = vld [vmem:[%s1 + $0xc8] sm:$0xff]
  %v53 = vld [vmem:[%s1 + $0xd0] sm:$0xff]
  %v54 = vld [vmem:[%s1 + $0xd8] sm:$0xff]
  %v55 = vld [vmem:[%s1 + $0xe0] sm:$0xff]
  %v56 = vld [vmem:[%s1 + $0xe8] sm:$0xff]
  %v57 = vld [vmem:[%s1 + $0xf0] sm:$0xff]
  %v58 = vld [vmem:[%s1 + $0xf8] sm:$0xff]
  %v59 = vld [vmem:[%s1 + $0x100] sm:$0xff]
  %v60 = vld [vmem:[%s1 + $0x108] sm:$0xff]
  %v61 = vld [vmem:[%s1 + $0x110] sm:$0xff]
  %v62 = vld [vmem:[%s1 + $0x118] sm:$0xff]
  %v63 = vld [vmem:[%s1 + $0x120] sm:$0xff]
  %v64 = vld [vmem:[%s1 + $0x128] sm:$0xff]
  %v65 = vld [vmem:[%s1 + $0x130] sm:$0xff]
  %v66 = vld [vmem:[%s1 + $0x138] sm:$0xff]
  %v67 = vld [vmem:[%s1 + $0x140] sm:$0xff]
  %v68 = vld [vmem:[%s1 + $0x148] sm:$0xff]
  %v69 = vld [vmem:[%s1 + $0x150] sm:$0xff]
  %v70 = vld [vmem:[%s1 + $0x158] sm:$0xff]
  %v71 = vld [vmem:[%s1 + $0x160] sm:$0xff]
  %v72 = vld [vmem:[%s1 + $0x168] sm:$0xff]
  %v73 = vld [vmem:[%s1 + $0x170] sm:$0xff]
  %v74 = vld [vmem:[%s1 + $0x178] sm:$0xff]
  %v75 = vld [vmem:[%s1 + $0x180] sm:$0xff]
  %v76 = vld [vmem:[%s1 + $0x188] sm:$0xff]
  %v77 = vld [vmem:[%s1 + $0x190] sm:$0xff]
  %v78 = vld [vmem:[%s1 + $0x198] sm:$0xff]
  %v79 = vld [vmem:[%s1 + $0x1a0] sm:$0xff]
  %v80 = vld [vmem:[%s1 + $0x1a8] sm:$0xff]
  %v81 = vld [vmem:[%s1 + $0x1b0] sm:$0xff]
  %v82 = vld [vmem:[%s1 + $0x1b8] sm:$0xff]
  %v83 = vld [vmem:[%s1 + $0x1c0] sm:$0xff]
  %v84 = vld [vmem:[%s1 + $0x1c8] sm:$0xff]
  %v85 = vld [vmem:[%s1 + $0x1d0] sm:$0xff]
  %v86 = vld [vmem:[%s1 + $0x1d8] sm:$0xff]
  %v87 = vld [vmem:[%s1 + $0x1e0] sm:$0xff]
  %v88 = vld [vmem:[%s1 + $0x1e8] sm:$0xff]
  %v89 = vld [vmem:[%s1 + $0x1f0] sm:$0xff]
  %v90 = vld [vmem:[%s1 + $0x1f8] sm:$0xff]
  %v91 = vld [vmem:[%s2] sm:$0xf]
  %v93 = vperm.slane %v91, 0
  %v94 = vperm.slane %v91, 1
  %v95 = vperm.slane %v91, 2
  %v96 = vperm.slane %v91, 3
  %101 = vmatpush.msra.mxu0 %v87
  %102 = vmatpush.msra.mxu0 %v83
  %103 = vmatpush.msra.mxu0 %v79
  %104 = vmatpush.msra.mxu0 %v75
  %105 = vmatpush.msra.mxu0 %v71
  %106 = vmatpush.msra.mxu0 %v67
  %107 = vmatpush.msra.mxu0 %v63
  %108 = vmatpush.msra.mxu0 %v59
  %109 = vmatpush.msra.mxu0 %v55
  %110 = vmatpush.msra.mxu0 %v51
  %111 = vmatpush.msra.mxu0 %v47
  %112 = vmatpush.msra.mxu0 %v43
  %113 = vmatpush.msra.mxu0 %v39
  %114 = vmatpush.msra.mxu0 %v35
  %115 = vmatpush.msra.mxu0 %v31
  %116 = vmatpush.msra.mxu0 %v27
  %117 = vmatmul.f32.gmra.mxu0 %v26
  %v118 = vpop.f32.mrf.mxu0
  %v119 = vadd.f32 %v93, %v118
  %120 = vdwg.mxu0
  %121 = vmatpush.msra.mxu0 %v88
  %122 = vmatpush.msra.mxu0 %v84
  %123 = vmatpush.msra.mxu0 %v80
  %124 = vmatpush.msra.mxu0 %v76
  %125 = vmatpush.msra.mxu0 %v72
  %126 = vmatpush.msra.mxu0 %v68
  %127 = vmatpush.msra.mxu0 %v64
  %128 = vmatpush.msra.mxu0 %v60
  %129 = vmatpush.msra.mxu0 %v56
  %130 = vmatpush.msra.mxu0 %v52
  %131 = vmatpush.msra.mxu0 %v48
  %132 = vmatpush.msra.mxu0 %v44
  %133 = vmatpush.msra.mxu0 %v40
  %134 = vmatpush.msra.mxu0 %v36
  %135 = vmatpush.msra.mxu0 %v32
  %136 = vmatpush.msra.mxu0 %v28
  %137 = vmatmul.f32.gmra.mxu0 %v26
  %v138 = vpop.f32.mrf.mxu0
  %v139 = vadd.f32 %v94, %v138
  %140 = vdwg.mxu0
  %141 = vmatpush.msra.mxu0 %v89
  %142 = vmatpush.msra.mxu0 %v85
  %143 = vmatpush.msra.mxu0 %v81
  %144 = vmatpush.msra.mxu0 %v77
  %145 = vmatpush.msra.mxu0 %v73
  %146 = vmatpush.msra.mxu0 %v69
  %147 = vmatpush.msra.mxu0 %v65
  %148 = vmatpush.msra.mxu0 %v61
  %149 = vmatpush.msra.mxu0 %v57
  %150 = vmatpush.msra.mxu0 %v53
  %151 = vmatpush.msra.mxu0 %v49
  %152 = vmatpush.msra.mxu0 %v45
  %153 = vmatpush.msra.mxu0 %v41
  %154 = vmatpush.msra.mxu0 %v37
  %155 = vmatpush.msra.mxu0 %v33
  %156 = vmatpush.msra.mxu0 %v29
  %157 = vmatmul.f32.gmra.mxu0 %v26
  %v158 = vpop.f32.mrf.mxu0
  %v159 = vadd.f32 %v95, %v158
  %160 = vdwg.mxu0
  %161 = vmatpush.msra.mxu0 %v90
  %162 = vmatpush.msra.mxu0 %v86
  %163 = vmatpush.msra.mxu0 %v82
  %164 = vmatpush.msra.mxu0 %v78
  %165 = vmatpush.msra.mxu0 %v74
  %166 = vmatpush.msra.mxu0 %v70
  %167 = vmatpush.msra.mxu0 %v66
  %168 = vmatpush.msra.mxu0 %v62
  %169 = vmatpush.msra.mxu0 %v58
  %170 = vmatpush.msra.mxu0 %v54
  %171 = vmatpush.msra.mxu0 %v50
  %172 = vmatpush.msra.mxu0 %v46
  %173 = vmatpush.msra.mxu0 %v42
  %174 = vmatpush.msra.mxu0 %v38
  %175 = vmatpush.msra.mxu0 %v34
  %176 = vmatpush.msra.mxu0 %v30
  %177 = vmatmul.f32.gmra.mxu0 %v26
  %v178 = vpop.f32.mrf.mxu0
  %v179 = vadd.f32 %v96, %v178
  %180 = vdwg.mxu0
  %v181 = vmul.f32 %v119, 0.5
  %v182 = vmul.f32 %v139, 0.5
  %v183 = vmul.f32 %v159, 0.5
  %v184 = vmul.f32 %v179, 0.5
  %v185 = vmul.f32 %v119, 0.70710677
  %v186 = vmul.f32 %v139, 0.70710677
  %v187 = vmul.f32 %v159, 0.70710677
  %v188 = vmul.f32 %v179, 0.70710677
  %v189 = vmul.f32 %v185, %v185
  %v190 = vmin.f32 16.0, %v189
  %v191 = vmul.f32 %v190, 2.1237322e-06
  %v192 = vadd.f32 %v191, 0.00028619796
  %v193 = vmul.f32 %v190, %v192
  %v194 = vadd.f32 %v193, 0.0036580483
  %v195 = vmul.f32 %v190, %v194
  %v196 = vadd.f32 %v195, 0.05243302
  %v197 = vmul.f32 %v190, %v196
  %v198 = vadd.f32 %v197, 0.18741608
  %v199 = vmul.f32 %v190, %v198
  %v200 = vadd.f32 %v199, 1.1283791
  %v201 = vmul.f32 %v185, %v200
  %v202 = vmul.f32 %v190, 3.8918573e-05
  %v203 = vadd.f32 %v202, 0.001143296
  %v204 = vmul.f32 %v190, %v203
  %v205 = vadd.f32 %v204, 0.014752088
  %v206 = vmul.f32 %v190, %v205
  %v207 = vadd.f32 %v206, 0.112945676
  %v208 = vmul.f32 %v190, %v207
  %v209 = vadd.f32 %v208, 0.4994258
  %v210 = vmul.f32 %v190, %v209
  %v211 = vadd.f32 %v210, 1.0
  %v212 = vrcp.pop %v211
  %v213 = vmul.f32 %v211, %v212
  %v214 = vsub.f32 1.0, %v213
  %v215 = vmul.f32 %v212, %v214
  %v216 = vadd.f32 %v212, %v215
  %vm217 = vweird.f32 %v211
  %vm218 = vweird.f32 %v212
  %vm219 = vmor %vm217, %vm218
  %v220 = vsel %vm219, %v212, %v216
  %v221 = vand.u32 2147483647, %v211
  %vm222 = vcmp.eq.f32.partialorder %v221, 8.507059e+37
  %v223 = vand.u32 %v211, 2147483648
  %v224 = vor.u32 1.1754944e-38, %v223
  %v225 = vsel %vm222, %v224, %v220
  %v226 = vmul.f32 %v201, %v225
  %v227 = vmin.f32 %v226, 1.0
  %v228 = vmax.f32 %v227, -1.0
  %v229 = vmul.f32 %v186, %v186
  %v230 = vmin.f32 16.0, %v229
  %v231 = vmul.f32 %v230, 2.1237322e-06
  %v232 = vadd.f32 %v231, 0.00028619796
  %v233 = vmul.f32 %v230, %v232
  %v234 = vadd.f32 %v233, 0.0036580483
  %v235 = vmul.f32 %v230, %v234
  %v236 = vadd.f32 %v235, 0.05243302
  %v237 = vmul.f32 %v230, %v236
  %v238 = vadd.f32 %v237, 0.18741608
  %v239 = vmul.f32 %v230, %v238
  %v240 = vadd.f32 %v239, 1.1283791
  %v241 = vmul.f32 %v186, %v240
  %v242 = vmul.f32 %v230, 3.8918573e-05
  %v243 = vadd.f32 %v242, 0.001143296
  %v244 = vmul.f32 %v230, %v243
  %v245 = vadd.f32 %v244, 0.014752088
  %v246 = vmul.f32 %v230, %v245
  %v247 = vadd.f32 %v246, 0.112945676
  %v248 = vmul.f32 %v230, %v247
  %v249 = vadd.f32 %v248, 0.4994258
  %v250 = vmul.f32 %v230, %v249
  %v251 = vadd.f32 %v250, 1.0
  %v252 = vrcp.pop %v251
  %v253 = vmul.f32 %v251, %v252
  %v254 = vsub.f32 1.0, %v253
  %v255 = vmul.f32 %v252, %v254
  %v256 = vadd.f32 %v252, %v255
  %vm257 = vweird.f32 %v251
  %vm258 = vweird.f32 %v252
  %vm259 = vmor %vm257, %vm258
  %v260 = vsel %vm259, %v252, %v256
  %v261 = vand.u32 2147483647, %v251
  %vm262 = vcmp.eq.f32.partialorder %v261, 8.507059e+37
  %v263 = vand.u32 %v251, 2147483648
  %v264 = vor.u32 1.1754944e-38, %v263
  %v265 = vsel %vm262, %v264, %v260
  %v266 = vmul.f32 %v241, %v265
  %v267 = vmin.f32 %v266, 1.0
  %v268 = vmax.f32 %v267, -1.0
  %v269 = vmul.f32 %v187, %v187
  %v270 = vmin.f32 16.0, %v269
  %v271 = vmul.f32 %v270, 2.1237322e-06
  %v272 = vadd.f32 %v271, 0.00028619796
  %v273 = vmul.f32 %v270, %v272
  %v274 = vadd.f32 %v273, 0.0036580483
  %v275 = vmul.f32 %v270, %v274
  %v276 = vadd.f32 %v275, 0.05243302
  %v277 = vmul.f32 %v270, %v276
  %v278 = vadd.f32 %v277, 0.18741608
  %v279 = vmul.f32 %v270, %v278
  %v280 = vadd.f32 %v279, 1.1283791
  %v281 = vmul.f32 %v187, %v280
  %v282 = vmul.f32 %v270, 3.8918573e-05
  %v283 = vadd.f32 %v282, 0.001143296
  %v284 = vmul.f32 %v270, %v283
  %v285 = vadd.f32 %v284, 0.014752088
  %v286 = vmul.f32 %v270, %v285
  %v287 = vadd.f32 %v286, 0.112945676
  %v288 = vmul.f32 %v270, %v287
  %v289 = vadd.f32 %v288, 0.4994258
  %v290 = vmul.f32 %v270, %v289
  %v291 = vadd.f32 %v290, 1.0
  %v292 = vrcp.pop %v291
  %v293 = vmul.f32 %v291, %v292
  %v294 = vsub.f32 1.0, %v293
  %v295 = vmul.f32 %v292, %v294
  %v296 = vadd.f32 %v292, %v295
  %vm297 = vweird.f32 %v291
  %vm298 = vweird.f32 %v292
  %vm299 = vmor %vm297, %vm298
  %v300 = vsel %vm299, %v292, %v296
  %v301 = vand.u32 2147483647, %v291
  %vm302 = vcmp.eq.f32.partialorder %v301, 8.507059e+37
  %v303 = vand.u32 %v291, 2147483648
  %v304 = vor.u32 1.1754944e-38, %v303
  %v305 = vsel %vm302, %v304, %v300
  %v306 = vmul.f32 %v281, %v305
  %v307 = vmin.f32 %v306, 1.0
  %v308 = vmax.f32 %v307, -1.0
  %v309 = vmul.f32 %v188, %v188
  %v310 = vmin.f32 16.0, %v309
  %v311 = vmul.f32 %v310, 2.1237322e-06
  %v312 = vadd.f32 %v311, 0.00028619796
  %v313 = vmul.f32 %v310, %v312
  %v314 = vadd.f32 %v313, 0.0036580483
  %v315 = vmul.f32 %v310, %v314
  %v316 = vadd.f32 %v315, 0.05243302
  %v317 = vmul.f32 %v310, %v316
  %v318 = vadd.f32 %v317, 0.18741608
  %v319 = vmul.f32 %v310, %v318
  %v320 = vadd.f32 %v319, 1.1283791
  %v321 = vmul.f32 %v188, %v320
  %v322 = vmul.f32 %v310, 3.8918573e-05
  %v323 = vadd.f32 %v322, 0.001143296
  %v324 = vmul.f32 %v310, %v323
  %v325 = vadd.f32 %v324, 0.014752088
  %v326 = vmul.f32 %v310, %v325
  %v327 = vadd.f32 %v326, 0.112945676
  %v328 = vmul.f32 %v310, %v327
  %v329 = vadd.f32 %v328, 0.4994258
  %v330 = vmul.f32 %v310, %v329
  %v331 = vadd.f32 %v330, 1.0
  %v332 = vrcp.pop %v331
  %v333 = vmul.f32 %v331, %v332
  %v334 = vsub.f32 1.0, %v333
  %v335 = vmul.f32 %v332, %v334
  %v336 = vadd.f32 %v332, %v335
  %vm337 = vweird.f32 %v331
  %vm338 = vweird.f32 %v332
  %vm339 = vmor %vm337, %vm338
  %v340 = vsel %vm339, %v332, %v336
  %v341 = vand.u32 2147483647, %v331
  %vm342 = vcmp.eq.f32.partialorder %v341, 8.507059e+37
  %v343 = vand.u32 %v331, 2147483648
  %v344 = vor.u32 1.1754944e-38, %v343
  %v345 = vsel %vm342, %v344, %v340
  %v346 = vmul.f32 %v321, %v345
  %v347 = vmin.f32 %v346, 1.0
  %v348 = vmax.f32 %v347, -1.0
  %v349 = vadd.f32 %v228, 1.0
  %v350 = vadd.f32 %v268, 1.0
  %v351 = vadd.f32 %v308, 1.0
  %v352 = vadd.f32 %v348, 1.0
  %v353 = vmul.f32 %v181, %v349
  %v354 = vmul.f32 %v182, %v350
  %v355 = vmul.f32 %v183, %v351
  %v356 = vmul.f32 %v184, %v352
  %v357 = vld [vmem:[%s3] sm:$0xff]
  %v358 = vld [vmem:[%s3 + $0x8] sm:$0xff]
  %v359 = vld [vmem:[%s3 + $0x10] sm:$0xff]
  %v360 = vld [vmem:[%s3 + $0x18] sm:$0xff]
  %v361 = vld [vmem:[%s3 + $0x20] sm:$0xff]
  %v362 = vld [vmem:[%s3 + $0x28] sm:$0xff]
  %v363 = vld [vmem:[%s3 + $0x30] sm:$0xff]
  %v364 = vld [vmem:[%s3 + $0x38] sm:$0xff]
  %v365 = vld [vmem:[%s3 + $0x40] sm:$0xff]
  %v366 = vld [vmem:[%s3 + $0x48] sm:$0xff]
  %v367 = vld [vmem:[%s3 + $0x50] sm:$0xff]
  %v368 = vld [vmem:[%s3 + $0x58] sm:$0xff]
  %v369 = vld [vmem:[%s3 + $0x60] sm:$0xff]
  %v370 = vld [vmem:[%s3 + $0x68] sm:$0xff]
  %v371 = vld [vmem:[%s3 + $0x70] sm:$0xff]
  %v372 = vld [vmem:[%s3 + $0x78] sm:$0xff]
  %v373 = vld [vmem:[%s3 + $0x80] sm:$0xff]
  %v374 = vld [vmem:[%s3 + $0x88] sm:$0xff]
  %v375 = vld [vmem:[%s3 + $0x90] sm:$0xff]
  %v376 = vld [vmem:[%s3 + $0x98] sm:$0xff]
  %v377 = vld [vmem:[%s3 + $0xa0] sm:$0xff]
  %v378 = vld [vmem:[%s3 + $0xa8] sm:$0xff]
  %v379 = vld [vmem:[%s3 + $0xb0] sm:$0xff]
  %v380 = vld [vmem:[%s3 + $0xb8] sm:$0xff]
  %v381 = vld [vmem:[%s3 + $0xc0] sm:$0xff]
  %v382 = vld [vmem:[%s3 + $0xc8] sm:$0xff]
  %v383 = vld [vmem:[%s3 + $0xd0] sm:$0xff]
  %v384 = vld [vmem:[%s3 + $0xd8] sm:$0xff]
  %v385 = vld [vmem:[%s3 + $0xe0] sm:$0xff]
  %v386 = vld [vmem:[%s3 + $0xe8] sm:$0xff]
  %v387 = vld [vmem:[%s3 + $0xf0] sm:$0xff]
  %v388 = vld [vmem:[%s3 + $0xf8] sm:$0xff]
  %v389 = vld [vmem:[%s3 + $0x100] sm:$0xff]
  %v390 = vld [vmem:[%s3 + $0x108] sm:$0xff]
  %v391 = vld [vmem:[%s3 + $0x110] sm:$0xff]
  %v392 = vld [vmem:[%s3 + $0x118] sm:$0xff]
  %v393 = vld [vmem:[%s3 + $0x120] sm:$0xff]
  %v394 = vld [vmem:[%s3 + $0x128] sm:$0xff]
  %v395 = vld [vmem:[%s3 + $0x130] sm:$0xff]
  %v396 = vld [vmem:[%s3 + $0x138] sm:$0xff]
  %v397 = vld [vmem:[%s3 + $0x140] sm:$0xff]
  %v398 = vld [vmem:[%s3 + $0x148] sm:$0xff]
  %v399 = vld [vmem:[%s3 + $0x150] sm:$0xff]
  %v400 = vld [vmem:[%s3 + $0x158] sm:$0xff]
  %v401 = vld [vmem:[%s3 + $0x160] sm:$0xff]
  %v402 = vld [vmem:[%s3 + $0x168] sm:$0xff]
  %v403 = vld [vmem:[%s3 + $0x170] sm:$0xff]
  %v404 = vld [vmem:[%s3 + $0x178] sm:$0xff]
  %v405 = vld [vmem:[%s3 + $0x180] sm:$0xff]
  %v406 = vld [vmem:[%s3 + $0x188] sm:$0xff]
  %v407 = vld [vmem:[%s3 + $0x190] sm:$0xff]
  %v408 = vld [vmem:[%s3 + $0x198] sm:$0xff]
  %v409 = vld [vmem:[%s3 + $0x1a0] sm:$0xff]
  %v410 = vld [vmem:[%s3 + $0x1a8] sm:$0xff]
  %v411 = vld [vmem:[%s3 + $0x1b0] sm:$0xff]
  %v412 = vld [vmem:[%s3 + $0x1b8] sm:$0xff]
  %v413 = vld [vmem:[%s3 + $0x1c0] sm:$0xff]
  %v414 = vld [vmem:[%s3 + $0x1c8] sm:$0xff]
  %v415 = vld [vmem:[%s3 + $0x1d0] sm:$0xff]
  %v416 = vld [vmem:[%s3 + $0x1d8] sm:$0xff]
  %v417 = vld [vmem:[%s3 + $0x1e0] sm:$0xff]
  %v418 = vld [vmem:[%s3 + $0x1e8] sm:$0xff]
  %v419 = vld [vmem:[%s3 + $0x1f0] sm:$0xff]
  %v420 = vld [vmem:[%s3 + $0x1f8] sm:$0xff]
  %v421 = vld [vmem:[%s3 + $0x200] sm:$0xff]
  %v422 = vld [vmem:[%s3 + $0x208] sm:$0xff]
  %v423 = vld [vmem:[%s3 + $0x210] sm:$0xff]
  %v424 = vld [vmem:[%s3 + $0x218] sm:$0xff]
  %v425 = vld [vmem:[%s3 + $0x220] sm:$0xff]
  %v426 = vld [vmem:[%s3 + $0x228] sm:$0xff]
  %v427 = vld [vmem:[%s3 + $0x230] sm:$0xff]
  %v428 = vld [vmem:[%s3 + $0x238] sm:$0xff]
  %v429 = vld [vmem:[%s3 + $0x240] sm:$0xff]
  %v430 = vld [vmem:[%s3 + $0x248] sm:$0xff]
  %v431 = vld [vmem:[%s3 + $0x250] sm:$0xff]
  %v432 = vld [vmem:[%s3 + $0x258] sm:$0xff]
  %v433 = vld [vmem:[%s3 + $0x260] sm:$0xff]
  %v434 = vld [vmem:[%s3 + $0x268] sm:$0xff]
  %v435 = vld [vmem:[%s3 + $0x270] sm:$0xff]
  %v436 = vld [vmem:[%s3 + $0x278] sm:$0xff]
  %v437 = vld [vmem:[%s3 + $0x280] sm:$0xff]
  %v438 = vld [vmem:[%s3 + $0x288] sm:$0xff]
  %v439 = vld [vmem:[%s3 + $0x290] sm:$0xff]
  %v440 = vld [vmem:[%s3 + $0x298] sm:$0xff]
  %v441 = vld [vmem:[%s3 + $0x2a0] sm:$0xff]
  %v442 = vld [vmem:[%s3 + $0x2a8] sm:$0xff]
  %v443 = vld [vmem:[%s3 + $0x2b0] sm:$0xff]
  %v444 = vld [vmem:[%s3 + $0x2b8] sm:$0xff]
  %v445 = vld [vmem:[%s3 + $0x2c0] sm:$0xff]
  %v446 = vld [vmem:[%s3 + $0x2c8] sm:$0xff]
  %v447 = vld [vmem:[%s3 + $0x2d0] sm:$0xff]
  %v448 = vld [vmem:[%s3 + $0x2d8] sm:$0xff]
  %v449 = vld [vmem:[%s3 + $0x2e0] sm:$0xff]
  %v450 = vld [vmem:[%s3 + $0x2e8] sm:$0xff]
  %v451 = vld [vmem:[%s3 + $0x2f0] sm:$0xff]
  %v452 = vld [vmem:[%s3 + $0x2f8] sm:$0xff]
  %v453 = vld [vmem:[%s3 + $0x300] sm:$0xff]
  %v454 = vld [vmem:[%s3 + $0x308] sm:$0xff]
  %v455 = vld [vmem:[%s3 + $0x310] sm:$0xff]
  %v456 = vld [vmem:[%s3 + $0x318] sm:$0xff]
  %v457 = vld [vmem:[%s3 + $0x320] sm:$0xff]
  %v458 = vld [vmem:[%s3 + $0x328] sm:$0xff]
  %v459 = vld [vmem:[%s3 + $0x330] sm:$0xff]
  %v460 = vld [vmem:[%s3 + $0x338] sm:$0xff]
  %v461 = vld [vmem:[%s3 + $0x340] sm:$0xff]
  %v462 = vld [vmem:[%s3 + $0x348] sm:$0xff]
  %v463 = vld [vmem:[%s3 + $0x350] sm:$0xff]
  %v464 = vld [vmem:[%s3 + $0x358] sm:$0xff]
  %v465 = vld [vmem:[%s3 + $0x360] sm:$0xff]
  %v466 = vld [vmem:[%s3 + $0x368] sm:$0xff]
  %v467 = vld [vmem:[%s3 + $0x370] sm:$0xff]
  %v468 = vld [vmem:[%s3 + $0x378] sm:$0xff]
  %v469 = vld [vmem:[%s3 + $0x380] sm:$0xff]
  %v470 = vld [vmem:[%s3 + $0x388] sm:$0xff]
  %v471 = vld [vmem:[%s3 + $0x390] sm:$0xff]
  %v472 = vld [vmem:[%s3 + $0x398] sm:$0xff]
  %v473 = vld [vmem:[%s3 + $0x3a0] sm:$0xff]
  %v474 = vld [vmem:[%s3 + $0x3a8] sm:$0xff]
  %v475 = vld [vmem:[%s3 + $0x3b0] sm:$0xff]
  %v476 = vld [vmem:[%s3 + $0x3b8] sm:$0xff]
  %v477 = vld [vmem:[%s3 + $0x3c0] sm:$0xff]
  %v478 = vld [vmem:[%s3 + $0x3c8] sm:$0xff]
  %v479 = vld [vmem:[%s3 + $0x3d0] sm:$0xff]
  %v480 = vld [vmem:[%s3 + $0x3d8] sm:$0xff]
  %v481 = vld [vmem:[%s3 + $0x3e0] sm:$0xff]
  %v482 = vld [vmem:[%s3 + $0x3e8] sm:$0xff]
  %v483 = vld [vmem:[%s3 + $0x3f0] sm:$0xff]
  %v484 = vld [vmem:[%s3 + $0x3f8] sm:$0xff]
  %v485 = vld [vmem:[%s3 + $0x400] sm:$0xff]
  %v486 = vld [vmem:[%s3 + $0x408] sm:$0xff]
  %v487 = vld [vmem:[%s3 + $0x410] sm:$0xff]
  %v488 = vld [vmem:[%s3 + $0x418] sm:$0xff]
  %v489 = vld [vmem:[%s3 + $0x420] sm:$0xff]
  %v490 = vld [vmem:[%s3 + $0x428] sm:$0xff]
  %v491 = vld [vmem:[%s3 + $0x430] sm:$0xff]
  %v492 = vld [vmem:[%s3 + $0x438] sm:$0xff]
  %v493 = vld [vmem:[%s3 + $0x440] sm:$0xff]
  %v494 = vld [vmem:[%s3 + $0x448] sm:$0xff]
  %v495 = vld [vmem:[%s3 + $0x450] sm:$0xff]
  %v496 = vld [vmem:[%s3 + $0x458] sm:$0xff]
  %v497 = vld [vmem:[%s3 + $0x460] sm:$0xff]
  %v498 = vld [vmem:[%s3 + $0x468] sm:$0xff]
  %v499 = vld [vmem:[%s3 + $0x470] sm:$0xff]
  %v500 = vld [vmem:[%s3 + $0x478] sm:$0xff]
  %v501 = vld [vmem:[%s3 + $0x480] sm:$0xff]
  %v502 = vld [vmem:[%s3 + $0x488] sm:$0xff]
  %v503 = vld [vmem:[%s3 + $0x490] sm:$0xff]
  %v504 = vld [vmem:[%s3 + $0x498] sm:$0xff]
  %v505 = vld [vmem:[%s3 + $0x4a0] sm:$0xff]
  %v506 = vld [vmem:[%s3 + $0x4a8] sm:$0xff]
  %v507 = vld [vmem:[%s3 + $0x4b0] sm:$0xff]
  %v508 = vld [vmem:[%s3 + $0x4b8] sm:$0xff]
  %v509 = vld [vmem:[%s3 + $0x4c0] sm:$0xff]
  %v510 = vld [vmem:[%s3 + $0x4c8] sm:$0xff]
  %v511 = vld [vmem:[%s3 + $0x4d0] sm:$0xff]
  %v512 = vld [vmem:[%s3 + $0x4d8] sm:$0xff]
  %v513 = vld [vmem:[%s3 + $0x4e0] sm:$0xff]
  %v514 = vld [vmem:[%s3 + $0x4e8] sm:$0xff]
  %v515 = vld [vmem:[%s3 + $0x4f0] sm:$0xff]
  %v516 = vld [vmem:[%s3 + $0x4f8] sm:$0xff]
  %v517 = vld [vmem:[%s3 + $0x500] sm:$0xff]
  %v518 = vld [vmem:[%s3 + $0x508] sm:$0xff]
  %v519 = vld [vmem:[%s3 + $0x510] sm:$0xff]
  %v520 = vld [vmem:[%s3 + $0x518] sm:$0xff]
  %v521 = vld [vmem:[%s3 + $0x520] sm:$0xff]
  %v522 = vld [vmem:[%s3 + $0x528] sm:$0xff]
  %v523 = vld [vmem:[%s3 + $0x530] sm:$0xff]
  %v524 = vld [vmem:[%s3 + $0x538] sm:$0xff]
  %v525 = vld [vmem:[%s3 + $0x540] sm:$0xff]
  %v526 = vld [vmem:[%s3 + $0x548] sm:$0xff]
  %v527 = vld [vmem:[%s3 + $0x550] sm:$0xff]
  %v528 = vld [vmem:[%s3 + $0x558] sm:$0xff]
  %v529 = vld [vmem:[%s3 + $0x560] sm:$0xff]
  %v530 = vld [vmem:[%s3 + $0x568] sm:$0xff]
  %v531 = vld [vmem:[%s3 + $0x570] sm:$0xff]
  %v532 = vld [vmem:[%s3 + $0x578] sm:$0xff]
  %v533 = vld [vmem:[%s3 + $0x580] sm:$0xff]
  %v534 = vld [vmem:[%s3 + $0x588] sm:$0xff]
  %v535 = vld [vmem:[%s3 + $0x590] sm:$0xff]
  %v536 = vld [vmem:[%s3 + $0x598] sm:$0xff]
  %v537 = vld [vmem:[%s3 + $0x5a0] sm:$0xff]
  %v538 = vld [vmem:[%s3 + $0x5a8] sm:$0xff]
  %v539 = vld [vmem:[%s3 + $0x5b0] sm:$0xff]
  %v540 = vld [vmem:[%s3 + $0x5b8] sm:$0xff]
  %v541 = vld [vmem:[%s3 + $0x5c0] sm:$0xff]
  %v542 = vld [vmem:[%s3 + $0x5c8] sm:$0xff]
  %v543 = vld [vmem:[%s3 + $0x5d0] sm:$0xff]
  %v544 = vld [vmem:[%s3 + $0x5d8] sm:$0xff]
  %v545 = vld [vmem:[%s3 + $0x5e0] sm:$0xff]
  %v546 = vld [vmem:[%s3 + $0x5e8] sm:$0xff]
  %v547 = vld [vmem:[%s3 + $0x5f0] sm:$0xff]
  %v548 = vld [vmem:[%s3 + $0x5f8] sm:$0xff]
  %v549 = vld [vmem:[%s3 + $0x600] sm:$0xff]
  %v550 = vld [vmem:[%s3 + $0x608] sm:$0xff]
  %v551 = vld [vmem:[%s3 + $0x610] sm:$0xff]
  %v552 = vld [vmem:[%s3 + $0x618] sm:$0xff]
  %v553 = vld [vmem:[%s3 + $0x620] sm:$0xff]
  %v554 = vld [vmem:[%s3 + $0x628] sm:$0xff]
  %v555 = vld [vmem:[%s3 + $0x630] sm:$0xff]
  %v556 = vld [vmem:[%s3 + $0x638] sm:$0xff]
  %v557 = vld [vmem:[%s3 + $0x640] sm:$0xff]
  %v558 = vld [vmem:[%s3 + $0x648] sm:$0xff]
  %v559 = vld [vmem:[%s3 + $0x650] sm:$0xff]
  %v560 = vld [vmem:[%s3 + $0x658] sm:$0xff]
  %v561 = vld [vmem:[%s3 + $0x660] sm:$0xff]
  %v562 = vld [vmem:[%s3 + $0x668] sm:$0xff]
  %v563 = vld [vmem:[%s3 + $0x670] sm:$0xff]
  %v564 = vld [vmem:[%s3 + $0x678] sm:$0xff]
  %v565 = vld [vmem:[%s3 + $0x680] sm:$0xff]
  %v566 = vld [vmem:[%s3 + $0x688] sm:$0xff]
  %v567 = vld [vmem:[%s3 + $0x690] sm:$0xff]
  %v568 = vld [vmem:[%s3 + $0x698] sm:$0xff]
  %v569 = vld [vmem:[%s3 + $0x6a0] sm:$0xff]
  %v570 = vld [vmem:[%s3 + $0x6a8] sm:$0xff]
  %v571 = vld [vmem:[%s3 + $0x6b0] sm:$0xff]
  %v572 = vld [vmem:[%s3 + $0x6b8] sm:$0xff]
  %v573 = vld [vmem:[%s3 + $0x6c0] sm:$0xff]
  %v574 = vld [vmem:[%s3 + $0x6c8] sm:$0xff]
  %v575 = vld [vmem:[%s3 + $0x6d0] sm:$0xff]
  %v576 = vld [vmem:[%s3 + $0x6d8] sm:$0xff]
  %v577 = vld [vmem:[%s3 + $0x6e0] sm:$0xff]
  %v578 = vld [vmem:[%s3 + $0x6e8] sm:$0xff]
  %v579 = vld [vmem:[%s3 + $0x6f0] sm:$0xff]
  %v580 = vld [vmem:[%s3 + $0x6f8] sm:$0xff]
  %v581 = vld [vmem:[%s3 + $0x700] sm:$0xff]
  %v582 = vld [vmem:[%s3 + $0x708] sm:$0xff]
  %v583 = vld [vmem:[%s3 + $0x710] sm:$0xff]
  %v584 = vld [vmem:[%s3 + $0x718] sm:$0xff]
  %v585 = vld [vmem:[%s3 + $0x720] sm:$0xff]
  %v586 = vld [vmem:[%s3 + $0x728] sm:$0xff]
  %v587 = vld [vmem:[%s3 + $0x730] sm:$0xff]
  %v588 = vld [vmem:[%s3 + $0x738] sm:$0xff]
  %v589 = vld [vmem:[%s3 + $0x740] sm:$0xff]
  %v590 = vld [vmem:[%s3 + $0x748] sm:$0xff]
  %v591 = vld [vmem:[%s3 + $0x750] sm:$0xff]
  %v592 = vld [vmem:[%s3 + $0x758] sm:$0xff]
  %v593 = vld [vmem:[%s3 + $0x760] sm:$0xff]
  %v594 = vld [vmem:[%s3 + $0x768] sm:$0xff]
  %v595 = vld [vmem:[%s3 + $0x770] sm:$0xff]
  %v596 = vld [vmem:[%s3 + $0x778] sm:$0xff]
  %v597 = vld [vmem:[%s3 + $0x780] sm:$0xff]
  %v598 = vld [vmem:[%s3 + $0x788] sm:$0xff]
  %v599 = vld [vmem:[%s3 + $0x790] sm:$0xff]
  %v600 = vld [vmem:[%s3 + $0x798] sm:$0xff]
  %v601 = vld [vmem:[%s3 + $0x7a0] sm:$0xff]
  %v602 = vld [vmem:[%s3 + $0x7a8] sm:$0xff]
  %v603 = vld [vmem:[%s3 + $0x7b0] sm:$0xff]
  %v604 = vld [vmem:[%s3 + $0x7b8] sm:$0xff]
  %v605 = vld [vmem:[%s3 + $0x7c0] sm:$0xff]
  %v606 = vld [vmem:[%s3 + $0x7c8] sm:$0xff]
  %v607 = vld [vmem:[%s3 + $0x7d0] sm:$0xff]
  %v608 = vld [vmem:[%s3 + $0x7d8] sm:$0xff]
  %v609 = vld [vmem:[%s3 + $0x7e0] sm:$0xff]
  %v610 = vld [vmem:[%s3 + $0x7e8] sm:$0xff]
  %v611 = vld [vmem:[%s3 + $0x7f0] sm:$0xff]
  %v612 = vld [vmem:[%s3 + $0x7f8] sm:$0xff]
  %v613 = vld [vmem:[%s4] sm:$0xf]
  %v615 = vperm.slane %v613, 0
  %v616 = vperm.slane %v613, 1
  %v617 = vperm.slane %v613, 2
  %v618 = vperm.slane %v613, 3
  %623 = vmatpush.msra.mxu0 %v417
  %624 = vmatpush.msra.mxu0 %v413
  %625 = vmatpush.msra.mxu0 %v409
  %626 = vmatpush.msra.mxu0 %v405
  %627 = vmatpush.msra.mxu0 %v401
  %628 = vmatpush.msra.mxu0 %v397
  %629 = vmatpush.msra.mxu0 %v393
  %630 = vmatpush.msra.mxu0 %v389
  %631 = vmatpush.msra.mxu0 %v385
  %632 = vmatpush.msra.mxu0 %v381
  %633 = vmatpush.msra.mxu0 %v377
  %634 = vmatpush.msra.mxu0 %v373
  %635 = vmatpush.msra.mxu0 %v369
  %636 = vmatpush.msra.mxu0 %v365
  %637 = vmatpush.msra.mxu0 %v361
  %638 = vmatpush.msra.mxu0 %v357
  %639 = vmatmul.f32.gmra.mxu0 %v353
  %v640 = vpop.f32.mrf.mxu0
  %v641 = vadd.f32 %v615, %v640
  %642 = vdwg.mxu0
  %643 = vmatpush.msra.mxu0 %v481
  %644 = vmatpush.msra.mxu0 %v477
  %645 = vmatpush.msra.mxu0 %v473
  %646 = vmatpush.msra.mxu0 %v469
  %647 = vmatpush.msra.mxu0 %v465
  %648 = vmatpush.msra.mxu0 %v461
  %649 = vmatpush.msra.mxu0 %v457
  %650 = vmatpush.msra.mxu0 %v453
  %651 = vmatpush.msra.mxu0 %v449
  %652 = vmatpush.msra.mxu0 %v445
  %653 = vmatpush.msra.mxu0 %v441
  %654 = vmatpush.msra.mxu0 %v437
  %655 = vmatpush.msra.mxu0 %v433
  %656 = vmatpush.msra.mxu0 %v429
  %657 = vmatpush.msra.mxu0 %v425
  %658 = vmatpush.msra.mxu0 %v421
  %659 = vmatmul.f32.gmra.mxu0 %v354
  %v660 = vpop.f32.mrf.mxu0
  %v661 = vadd.f32 %v641, %v660
  %662 = vdwg.mxu0
  %663 = vmatpush.msra.mxu0 %v545
  %664 = vmatpush.msra.mxu0 %v541
  %665 = vmatpush.msra.mxu0 %v537
  %666 = vmatpush.msra.mxu0 %v533
  %667 = vmatpush.msra.mxu0 %v529
  %668 = vmatpush.msra.mxu0 %v525
  %669 = vmatpush.msra.mxu0 %v521
  %670 = vmatpush.msra.mxu0 %v517
  %671 = vmatpush.msra.mxu0 %v513
  %672 = vmatpush.msra.mxu0 %v509
  %673 = vmatpush.msra.mxu0 %v505
  %674 = vmatpush.msra.mxu0 %v501
  %675 = vmatpush.msra.mxu0 %v497
  %676 = vmatpush.msra.mxu0 %v493
  %677 = vmatpush.msra.mxu0 %v489
  %678 = vmatpush.msra.mxu0 %v485
  %679 = vmatmul.f32.gmra.mxu0 %v355
  %v680 = vpop.f32.mrf.mxu0
  %v681 = vadd.f32 %v661, %v680
  %682 = vdwg.mxu0
  %683 = vmatpush.msra.mxu0 %v609
  %684 = vmatpush.msra.mxu0 %v605
  %685 = vmatpush.msra.mxu0 %v601
  %686 = vmatpush.msra.mxu0 %v597
  %687 = vmatpush.msra.mxu0 %v593
  %688 = vmatpush.msra.mxu0 %v589
  %689 = vmatpush.msra.mxu0 %v585
  %690 = vmatpush.msra.mxu0 %v581
  %691 = vmatpush.msra.mxu0 %v577
  %692 = vmatpush.msra.mxu0 %v573
  %693 = vmatpush.msra.mxu0 %v569
  %694 = vmatpush.msra.mxu0 %v565
  %695 = vmatpush.msra.mxu0 %v561
  %696 = vmatpush.msra.mxu0 %v557
  %697 = vmatpush.msra.mxu0 %v553
  %698 = vmatpush.msra.mxu0 %v549
  %699 = vmatmul.f32.gmra.mxu0 %v356
  %v700 = vpop.f32.mrf.mxu0
  %v701 = vadd.f32 %v681, %v700
  %702 = vdwg.mxu0
  %703 = vmatpush.msra.mxu0 %v418
  %704 = vmatpush.msra.mxu0 %v414
  %705 = vmatpush.msra.mxu0 %v410
  %706 = vmatpush.msra.mxu0 %v406
  %707 = vmatpush.msra.mxu0 %v402
  %708 = vmatpush.msra.mxu0 %v398
  %709 = vmatpush.msra.mxu0 %v394
  %710 = vmatpush.msra.mxu0 %v390
  %711 = vmatpush.msra.mxu0 %v386
  %712 = vmatpush.msra.mxu0 %v382
  %713 = vmatpush.msra.mxu0 %v378
  %714 = vmatpush.msra.mxu0 %v374
  %715 = vmatpush.msra.mxu0 %v370
  %716 = vmatpush.msra.mxu0 %v366
  %717 = vmatpush.msra.mxu0 %v362
  %718 = vmatpush.msra.mxu0 %v358
  %719 = vmatmul.f32.gmra.mxu0 %v353
  %v720 = vpop.f32.mrf.mxu0
  %v721 = vadd.f32 %v616, %v720
  %722 = vdwg.mxu0
  %723 = vmatpush.msra.mxu0 %v482
  %724 = vmatpush.msra.mxu0 %v478
  %725 = vmatpush.msra.mxu0 %v474
  %726 = vmatpush.msra.mxu0 %v470
  %727 = vmatpush.msra.mxu0 %v466
  %728 = vmatpush.msra.mxu0 %v462
  %729 = vmatpush.msra.mxu0 %v458
  %730 = vmatpush.msra.mxu0 %v454
  %731 = vmatpush.msra.mxu0 %v450
  %732 = vmatpush.msra.mxu0 %v446
  %733 = vmatpush.msra.mxu0 %v442
  %734 = vmatpush.msra.mxu0 %v438
  %735 = vmatpush.msra.mxu0 %v434
  %736 = vmatpush.msra.mxu0 %v430
  %737 = vmatpush.msra.mxu0 %v426
  %738 = vmatpush.msra.mxu0 %v422
  %739 = vmatmul.f32.gmra.mxu0 %v354
  %v740 = vpop.f32.mrf.mxu0
  %v741 = vadd.f32 %v721, %v740
  %742 = vdwg.mxu0
  %743 = vmatpush.msra.mxu0 %v546
  %744 = vmatpush.msra.mxu0 %v542
  %745 = vmatpush.msra.mxu0 %v538
  %746 = vmatpush.msra.mxu0 %v534
  %747 = vmatpush.msra.mxu0 %v530
  %748 = vmatpush.msra.mxu0 %v526
  %749 = vmatpush.msra.mxu0 %v522
  %750 = vmatpush.msra.mxu0 %v518
  %751 = vmatpush.msra.mxu0 %v514
  %752 = vmatpush.msra.mxu0 %v510
  %753 = vmatpush.msra.mxu0 %v506
  %754 = vmatpush.msra.mxu0 %v502
  %755 = vmatpush.msra.mxu0 %v498
  %756 = vmatpush.msra.mxu0 %v494
  %757 = vmatpush.msra.mxu0 %v490
  %758 = vmatpush.msra.mxu0 %v486
  %759 = vmatmul.f32.gmra.mxu0 %v355
  %v760 = vpop.f32.mrf.mxu0
  %v761 = vadd.f32 %v741, %v760
  %762 = vdwg.mxu0
  %763 = vmatpush.msra.mxu0 %v610
  %764 = vmatpush.msra.mxu0 %v606
  %765 = vmatpush.msra.mxu0 %v602
  %766 = vmatpush.msra.mxu0 %v598
  %767 = vmatpush.msra.mxu0 %v594
  %768 = vmatpush.msra.mxu0 %v590
  %769 = vmatpush.msra.mxu0 %v586
  %770 = vmatpush.msra.mxu0 %v582
  %771 = vmatpush.msra.mxu0 %v578
  %772 = vmatpush.msra.mxu0 %v574
  %773 = vmatpush.msra.mxu0 %v570
  %774 = vmatpush.msra.mxu0 %v566
  %775 = vmatpush.msra.mxu0 %v562
  %776 = vmatpush.msra.mxu0 %v558
  %777 = vmatpush.msra.mxu0 %v554
  %778 = vmatpush.msra.mxu0 %v550
  %779 = vmatmul.f32.gmra.mxu0 %v356
  %v780 = vpop.f32.mrf.mxu0
  %v781 = vadd.f32 %v761, %v780
  %782 = vdwg.mxu0
  %783 = vmatpush.msra.mxu0 %v419
  %784 = vmatpush.msra.mxu0 %v415
  %785 = vmatpush.msra.mxu0 %v411
  %786 = vmatpush.msra.mxu0 %v407
  %787 = vmatpush.msra.mxu0 %v403
  %788 = vmatpush.msra.mxu0 %v399
  %789 = vmatpush.msra.mxu0 %v395
  %790 = vmatpush.msra.mxu0 %v391
  %791 = vmatpush.msra.mxu0 %v387
  %792 = vmatpush.msra.mxu0 %v383
  %793 = vmatpush.msra.mxu0 %v379
  %794 = vmatpush.msra.mxu0 %v375
  %795 = vmatpush.msra.mxu0 %v371
  %796 = vmatpush.msra.mxu0 %v367
  %797 = vmatpush.msra.mxu0 %v363
  %798 = vmatpush.msra.mxu0 %v359
  %799 = vmatmul.f32.gmra.mxu0 %v353
  %v800 = vpop.f32.mrf.mxu0
  %v801 = vadd.f32 %v617, %v800
  %802 = vdwg.mxu0
  %803 = vmatpush.msra.mxu0 %v483
  %804 = vmatpush.msra.mxu0 %v479
  %805 = vmatpush.msra.mxu0 %v475
  %806 = vmatpush.msra.mxu0 %v471
  %807 = vmatpush.msra.mxu0 %v467
  %808 = vmatpush.msra.mxu0 %v463
  %809 = vmatpush.msra.mxu0 %v459
  %810 = vmatpush.msra.mxu0 %v455
  %811 = vmatpush.msra.mxu0 %v451
  %812 = vmatpush.msra.mxu0 %v447
  %813 = vmatpush.msra.mxu0 %v443
  %814 = vmatpush.msra.mxu0 %v439
  %815 = vmatpush.msra.mxu0 %v435
  %816 = vmatpush.msra.mxu0 %v431
  %817 = vmatpush.msra.mxu0 %v427
  %818 = vmatpush.msra.mxu0 %v423
  %819 = vmatmul.f32.gmra.mxu0 %v354
  %v820 = vpop.f32.mrf.mxu0
  %v821 = vadd.f32 %v801, %v820
  %822 = vdwg.mxu0
  %823 = vmatpush.msra.mxu0 %v547
  %824 = vmatpush.msra.mxu0 %v543
  %825 = vmatpush.msra.mxu0 %v539
  %826 = vmatpush.msra.mxu0 %v535
  %827 = vmatpush.msra.mxu0 %v531
  %828 = vmatpush.msra.mxu0 %v527
  %829 = vmatpush.msra.mxu0 %v523
  %830 = vmatpush.msra.mxu0 %v519
  %831 = vmatpush.msra.mxu0 %v515
  %832 = vmatpush.msra.mxu0 %v511
  %833 = vmatpush.msra.mxu0 %v507
  %834 = vmatpush.msra.mxu0 %v503
  %835 = vmatpush.msra.mxu0 %v499
  %836 = vmatpush.msra.mxu0 %v495
  %837 = vmatpush.msra.mxu0 %v491
  %838 = vmatpush.msra.mxu0 %v487
  %839 = vmatmul.f32.gmra.mxu0 %v355
  %v840 = vpop.f32.mrf.mxu0
  %v841 = vadd.f32 %v821, %v840
  %842 = vdwg.mxu0
  %843 = vmatpush.msra.mxu0 %v611
  %844 = vmatpush.msra.mxu0 %v607
  %845 = vmatpush.msra.mxu0 %v603
  %846 = vmatpush.msra.mxu0 %v599
  %847 = vmatpush.msra.mxu0 %v595
  %848 = vmatpush.msra.mxu0 %v591
  %849 = vmatpush.msra.mxu0 %v587
  %850 = vmatpush.msra.mxu0 %v583
  %851 = vmatpush.msra.mxu0 %v579
  %852 = vmatpush.msra.mxu0 %v575
  %853 = vmatpush.msra.mxu0 %v571
  %854 = vmatpush.msra.mxu0 %v567
  %855 = vmatpush.msra.mxu0 %v563
  %856 = vmatpush.msra.mxu0 %v559
  %857 = vmatpush.msra.mxu0 %v555
  %858 = vmatpush.msra.mxu0 %v551
  %859 = vmatmul.f32.gmra.mxu0 %v356
  %v860 = vpop.f32.mrf.mxu0
  %v861 = vadd.f32 %v841, %v860
  %862 = vdwg.mxu0
  %863 = vmatpush.msra.mxu0 %v420
  %864 = vmatpush.msra.mxu0 %v416
  %865 = vmatpush.msra.mxu0 %v412
  %866 = vmatpush.msra.mxu0 %v408
  %867 = vmatpush.msra.mxu0 %v404
  %868 = vmatpush.msra.mxu0 %v400
  %869 = vmatpush.msra.mxu0 %v396
  %870 = vmatpush.msra.mxu0 %v392
  %871 = vmatpush.msra.mxu0 %v388
  %872 = vmatpush.msra.mxu0 %v384
  %873 = vmatpush.msra.mxu0 %v380
  %874 = vmatpush.msra.mxu0 %v376
  %875 = vmatpush.msra.mxu0 %v372
  %876 = vmatpush.msra.mxu0 %v368
  %877 = vmatpush.msra.mxu0 %v364
  %878 = vmatpush.msra.mxu0 %v360
  %879 = vmatmul.f32.gmra.mxu0 %v353
  %v880 = vpop.f32.mrf.mxu0
  %v881 = vadd.f32 %v618, %v880
  %882 = vdwg.mxu0
  %883 = vmatpush.msra.mxu0 %v484
  %884 = vmatpush.msra.mxu0 %v480
  %885 = vmatpush.msra.mxu0 %v476
  %886 = vmatpush.msra.mxu0 %v472
  %887 = vmatpush.msra.mxu0 %v468
  %888 = vmatpush.msra.mxu0 %v464
  %889 = vmatpush.msra.mxu0 %v460
  %890 = vmatpush.msra.mxu0 %v456
  %891 = vmatpush.msra.mxu0 %v452
  %892 = vmatpush.msra.mxu0 %v448
  %893 = vmatpush.msra.mxu0 %v444
  %894 = vmatpush.msra.mxu0 %v440
  %895 = vmatpush.msra.mxu0 %v436
  %896 = vmatpush.msra.mxu0 %v432
  %897 = vmatpush.msra.mxu0 %v428
  %898 = vmatpush.msra.mxu0 %v424
  %899 = vmatmul.f32.gmra.mxu0 %v354
  %v900 = vpop.f32.mrf.mxu0
  %v901 = vadd.f32 %v881, %v900
  %902 = vdwg.mxu0
  %903 = vmatpush.msra.mxu0 %v548
  %904 = vmatpush.msra.mxu0 %v544
  %905 = vmatpush.msra.mxu0 %v540
  %906 = vmatpush.msra.mxu0 %v536
  %907 = vmatpush.msra.mxu0 %v532
  %908 = vmatpush.msra.mxu0 %v528
  %909 = vmatpush.msra.mxu0 %v524
  %910 = vmatpush.msra.mxu0 %v520
  %911 = vmatpush.msra.mxu0 %v516
  %912 = vmatpush.msra.mxu0 %v512
  %913 = vmatpush.msra.mxu0 %v508
  %914 = vmatpush.msra.mxu0 %v504
  %915 = vmatpush.msra.mxu0 %v500
  %916 = vmatpush.msra.mxu0 %v496
  %917 = vmatpush.msra.mxu0 %v492
  %918 = vmatpush.msra.mxu0 %v488
  %919 = vmatmul.f32.gmra.mxu0 %v355
  %v920 = vpop.f32.mrf.mxu0
  %v921 = vadd.f32 %v901, %v920
  %922 = vdwg.mxu0
  %923 = vmatpush.msra.mxu0 %v612
  %924 = vmatpush.msra.mxu0 %v608
  %925 = vmatpush.msra.mxu0 %v604
  %926 = vmatpush.msra.mxu0 %v600
  %927 = vmatpush.msra.mxu0 %v596
  %928 = vmatpush.msra.mxu0 %v592
  %929 = vmatpush.msra.mxu0 %v588
  %930 = vmatpush.msra.mxu0 %v584
  %931 = vmatpush.msra.mxu0 %v580
  %932 = vmatpush.msra.mxu0 %v576
  %933 = vmatpush.msra.mxu0 %v572
  %934 = vmatpush.msra.mxu0 %v568
  %935 = vmatpush.msra.mxu0 %v564
  %936 = vmatpush.msra.mxu0 %v560
  %937 = vmatpush.msra.mxu0 %v556
  %938 = vmatpush.msra.mxu0 %v552
  %939 = vmatmul.f32.gmra.mxu0 %v356
  %v940 = vpop.f32.mrf.mxu0
  %v941 = vadd.f32 %v921, %v940
  %942 = vdwg.mxu0
  %v943 = vmul.f32 %v701, 0.5
  %v944 = vmul.f32 %v781, 0.5
  %v945 = vmul.f32 %v861, 0.5
  %v946 = vmul.f32 %v941, 0.5
  %v947 = vmul.f32 %v701, 0.70710677
  %v948 = vmul.f32 %v781, 0.70710677
  %v949 = vmul.f32 %v861, 0.70710677
  %v950 = vmul.f32 %v941, 0.70710677
  %v951 = vmul.f32 %v947, %v947
  %v952 = vmin.f32 16.0, %v951
  %v953 = vmul.f32 %v952, 2.1237322e-06
  %v954 = vadd.f32 %v953, 0.00028619796
  %v955 = vmul.f32 %v952, %v954
  %v956 = vadd.f32 %v955, 0.0036580483
  %v957 = vmul.f32 %v952, %v956
  %v958 = vadd.f32 %v957, 0.05243302
  %v959 = vmul.f32 %v952, %v958
  %v960 = vadd.f32 %v959, 0.18741608
  %v961 = vmul.f32 %v952, %v960
  %v962 = vadd.f32 %v961, 1.1283791
  %v963 = vmul.f32 %v947, %v962
  %v964 = vmul.f32 %v952, 3.8918573e-05
  %v965 = vadd.f32 %v964, 0.001143296
  %v966 = vmul.f32 %v952, %v965
  %v967 = vadd.f32 %v966, 0.014752088
  %v968 = vmul.f32 %v952, %v967
  %v969 = vadd.f32 %v968, 0.112945676
  %v970 = vmul.f32 %v952, %v969
  %v971 = vadd.f32 %v970, 0.4994258
  %v972 = vmul.f32 %v952, %v971
  %v973 = vadd.f32 %v972, 1.0
  %v974 = vrcp.pop %v973
  %v975 = vmul.f32 %v973, %v974
  %v976 = vsub.f32 1.0, %v975
  %v977 = vmul.f32 %v974, %v976
  %v978 = vadd.f32 %v974, %v977
  %vm979 = vweird.f32 %v973
  %vm980 = vweird.f32 %v974
  %vm981 = vmor %vm979, %vm980
  %v982 = vsel %vm981, %v974, %v978
  %v983 = vand.u32 2147483647, %v973
  %vm984 = vcmp.eq.f32.partialorder %v983, 8.507059e+37
  %v985 = vand.u32 %v973, 2147483648
  %v986 = vor.u32 1.1754944e-38, %v985
  %v987 = vsel %vm984, %v986, %v982
  %v988 = vmul.f32 %v963, %v987
  %v989 = vmin.f32 %v988, 1.0
  %v990 = vmax.f32 %v989, -1.0
  %v991 = vmul.f32 %v948, %v948
  %v992 = vmin.f32 16.0, %v991
  %v993 = vmul.f32 %v992, 2.1237322e-06
  %v994 = vadd.f32 %v993, 0.00028619796
  %v995 = vmul.f32 %v992, %v994
  %v996 = vadd.f32 %v995, 0.0036580483
  %v997 = vmul.f32 %v992, %v996
  %v998 = vadd.f32 %v997, 0.05243302
  %v999 = vmul.f32 %v992, %v998
  %v1000 = vadd.f32 %v999, 0.18741608
  %v1001 = vmul.f32 %v992, %v1000
  %v1002 = vadd.f32 %v1001, 1.1283791
  %v1003 = vmul.f32 %v948, %v1002
  %v1004 = vmul.f32 %v992, 3.8918573e-05
  %v1005 = vadd.f32 %v1004, 0.001143296
  %v1006 = vmul.f32 %v992, %v1005
  %v1007 = vadd.f32 %v1006, 0.014752088
  %v1008 = vmul.f32 %v992, %v1007
  %v1009 = vadd.f32 %v1008, 0.112945676
  %v1010 = vmul.f32 %v992, %v1009
  %v1011 = vadd.f32 %v1010, 0.4994258
  %v1012 = vmul.f32 %v992, %v1011
  %v1013 = vadd.f32 %v1012, 1.0
  %v1014 = vrcp.pop %v1013
  %v1015 = vmul.f32 %v1013, %v1014
  %v1016 = vsub.f32 1.0, %v1015
  %v1017 = vmul.f32 %v1014, %v1016
  %v1018 = vadd.f32 %v1014, %v1017
  %vm1019 = vweird.f32 %v1013
  %vm1020 = vweird.f32 %v1014
  %vm1021 = vmor %vm1019, %vm1020
  %v1022 = vsel %vm1021, %v1014, %v1018
  %v1023 = vand.u32 2147483647, %v1013
  %vm1024 = vcmp.eq.f32.partialorder %v1023, 8.507059e+37
  %v1025 = vand.u32 %v1013, 2147483648
  %v1026 = vor.u32 1.1754944e-38, %v1025
  %v1027 = vsel %vm1024, %v1026, %v1022
  %v1028 = vmul.f32 %v1003, %v1027
  %v1029 = vmin.f32 %v1028, 1.0
  %v1030 = vmax.f32 %v1029, -1.0
  %v1031 = vmul.f32 %v949, %v949
  %v1032 = vmin.f32 16.0, %v1031
  %v1033 = vmul.f32 %v1032, 2.1237322e-06
  %v1034 = vadd.f32 %v1033, 0.00028619796
  %v1035 = vmul.f32 %v1032, %v1034
  %v1036 = vadd.f32 %v1035, 0.0036580483
  %v1037 = vmul.f32 %v1032, %v1036
  %v1038 = vadd.f32 %v1037, 0.05243302
  %v1039 = vmul.f32 %v1032, %v1038
  %v1040 = vadd.f32 %v1039, 0.18741608
  %v1041 = vmul.f32 %v1032, %v1040
  %v1042 = vadd.f32 %v1041, 1.1283791
  %v1043 = vmul.f32 %v949, %v1042
  %v1044 = vmul.f32 %v1032, 3.8918573e-05
  %v1045 = vadd.f32 %v1044, 0.001143296
  %v1046 = vmul.f32 %v1032, %v1045
  %v1047 = vadd.f32 %v1046, 0.014752088
  %v1048 = vmul.f32 %v1032, %v1047
  %v1049 = vadd.f32 %v1048, 0.112945676
  %v1050 = vmul.f32 %v1032, %v1049
  %v1051 = vadd.f32 %v1050, 0.4994258
  %v1052 = vmul.f32 %v1032, %v1051
  %v1053 = vadd.f32 %v1052, 1.0
  %v1054 = vrcp.pop %v1053
  %v1055 = vmul.f32 %v1053, %v1054
  %v1056 = vsub.f32 1.0, %v1055
  %v1057 = vmul.f32 %v1054, %v1056
  %v1058 = vadd.f32 %v1054, %v1057
  %vm1059 = vweird.f32 %v1053
  %vm1060 = vweird.f32 %v1054
  %vm1061 = vmor %vm1059, %vm1060
  %v1062 = vsel %vm1061, %v1054, %v1058
  %v1063 = vand.u32 2147483647, %v1053
  %vm1064 = vcmp.eq.f32.partialorder %v1063, 8.507059e+37
  %v1065 = vand.u32 %v1053, 2147483648
  %v1066 = vor.u32 1.1754944e-38, %v1065
  %v1067 = vsel %vm1064, %v1066, %v1062
  %v1068 = vmul.f32 %v1043, %v1067
  %v1069 = vmin.f32 %v1068, 1.0
  %v1070 = vmax.f32 %v1069, -1.0
  %v1071 = vmul.f32 %v950, %v950
  %v1072 = vmin.f32 16.0, %v1071
  %v1073 = vmul.f32 %v1072, 2.1237322e-06
  %v1074 = vadd.f32 %v1073, 0.00028619796
  %v1075 = vmul.f32 %v1072, %v1074
  %v1076 = vadd.f32 %v1075, 0.0036580483
  %v1077 = vmul.f32 %v1072, %v1076
  %v1078 = vadd.f32 %v1077, 0.05243302
  %v1079 = vmul.f32 %v1072, %v1078
  %v1080 = vadd.f32 %v1079, 0.18741608
  %v1081 = vmul.f32 %v1072, %v1080
  %v1082 = vadd.f32 %v1081, 1.1283791
  %v1083 = vmul.f32 %v950, %v1082
  %v1084 = vmul.f32 %v1072, 3.8918573e-05
  %v1085 = vadd.f32 %v1084, 0.001143296
  %v1086 = vmul.f32 %v1072, %v1085
  %v1087 = vadd.f32 %v1086, 0.014752088
  %v1088 = vmul.f32 %v1072, %v1087
  %v1089 = vadd.f32 %v1088, 0.112945676
  %v1090 = vmul.f32 %v1072, %v1089
  %v1091 = vadd.f32 %v1090, 0.4994258
  %v1092 = vmul.f32 %v1072, %v1091
  %v1093 = vadd.f32 %v1092, 1.0
  %v1094 = vrcp.pop %v1093
  %v1095 = vmul.f32 %v1093, %v1094
  %v1096 = vsub.f32 1.0, %v1095
  %v1097 = vmul.f32 %v1094, %v1096
  %v1098 = vadd.f32 %v1094, %v1097
  %vm1099 = vweird.f32 %v1093
  %vm1100 = vweird.f32 %v1094
  %vm1101 = vmor %vm1099, %vm1100
  %v1102 = vsel %vm1101, %v1094, %v1098
  %v1103 = vand.u32 2147483647, %v1093
  %vm1104 = vcmp.eq.f32.partialorder %v1103, 8.507059e+37
  %v1105 = vand.u32 %v1093, 2147483648
  %v1106 = vor.u32 1.1754944e-38, %v1105
  %v1107 = vsel %vm1104, %v1106, %v1102
  %v1108 = vmul.f32 %v1083, %v1107
  %v1109 = vmin.f32 %v1108, 1.0
  %v1110 = vmax.f32 %v1109, -1.0
  %v1111 = vadd.f32 %v990, 1.0
  %v1112 = vadd.f32 %v1030, 1.0
  %v1113 = vadd.f32 %v1070, 1.0
  %v1114 = vadd.f32 %v1110, 1.0
  %v1115 = vmul.f32 %v943, %v1111
  %v1116 = vmul.f32 %v944, %v1112
  %v1117 = vmul.f32 %v945, %v1113
  %v1118 = vmul.f32 %v946, %v1114
  %v1119 = vld [vmem:[%s5] sm:$0xff]
  %v1120 = vld [vmem:[%s5 + $0x8] sm:$0xff]
  %v1121 = vld [vmem:[%s5 + $0x10] sm:$0xff]
  %v1122 = vld [vmem:[%s5 + $0x18] sm:$0xff]
  %v1123 = vld [vmem:[%s5 + $0x20] sm:$0xff]
  %v1124 = vld [vmem:[%s5 + $0x28] sm:$0xff]
  %v1125 = vld [vmem:[%s5 + $0x30] sm:$0xff]
  %v1126 = vld [vmem:[%s5 + $0x38] sm:$0xff]
  %v1127 = vld [vmem:[%s5 + $0x40] sm:$0xff]
  %v1128 = vld [vmem:[%s5 + $0x48] sm:$0xff]
  %v1129 = vld [vmem:[%s5 + $0x50] sm:$0xff]
  %v1130 = vld [vmem:[%s5 + $0x58] sm:$0xff]
  %v1131 = vld [vmem:[%s5 + $0x60] sm:$0xff]
  %v1132 = vld [vmem:[%s5 + $0x68] sm:$0xff]
  %v1133 = vld [vmem:[%s5 + $0x70] sm:$0xff]
  %v1134 = vld [vmem:[%s5 + $0x78] sm:$0xff]
  %v1135 = vld [vmem:[%s5 + $0x80] sm:$0xff]
  %v1136 = vld [vmem:[%s5 + $0x88] sm:$0xff]
  %v1137 = vld [vmem:[%s5 + $0x90] sm:$0xff]
  %v1138 = vld [vmem:[%s5 + $0x98] sm:$0xff]
  %v1139 = vld [vmem:[%s5 + $0xa0] sm:$0xff]
  %v1140 = vld [vmem:[%s5 + $0xa8] sm:$0xff]
  %v1141 = vld [vmem:[%s5 + $0xb0] sm:$0xff]
  %v1142 = vld [vmem:[%s5 + $0xb8] sm:$0xff]
  %v1143 = vld [vmem:[%s5 + $0xc0] sm:$0xff]
  %v1144 = vld [vmem:[%s5 + $0xc8] sm:$0xff]
  %v1145 = vld [vmem:[%s5 + $0xd0] sm:$0xff]
  %v1146 = vld [vmem:[%s5 + $0xd8] sm:$0xff]
  %v1147 = vld [vmem:[%s5 + $0xe0] sm:$0xff]
  %v1148 = vld [vmem:[%s5 + $0xe8] sm:$0xff]
  %v1149 = vld [vmem:[%s5 + $0xf0] sm:$0xff]
  %v1150 = vld [vmem:[%s5 + $0xf8] sm:$0xff]
  %v1151 = vld [vmem:[%s5 + $0x100] sm:$0xff]
  %v1152 = vld [vmem:[%s5 + $0x108] sm:$0xff]
  %v1153 = vld [vmem:[%s5 + $0x110] sm:$0xff]
  %v1154 = vld [vmem:[%s5 + $0x118] sm:$0xff]
  %v1155 = vld [vmem:[%s5 + $0x120] sm:$0xff]
  %v1156 = vld [vmem:[%s5 + $0x128] sm:$0xff]
  %v1157 = vld [vmem:[%s5 + $0x130] sm:$0xff]
  %v1158 = vld [vmem:[%s5 + $0x138] sm:$0xff]
  %v1159 = vld [vmem:[%s5 + $0x140] sm:$0xff]
  %v1160 = vld [vmem:[%s5 + $0x148] sm:$0xff]
  %v1161 = vld [vmem:[%s5 + $0x150] sm:$0xff]
  %v1162 = vld [vmem:[%s5 + $0x158] sm:$0xff]
  %v1163 = vld [vmem:[%s5 + $0x160] sm:$0xff]
  %v1164 = vld [vmem:[%s5 + $0x168] sm:$0xff]
  %v1165 = vld [vmem:[%s5 + $0x170] sm:$0xff]
  %v1166 = vld [vmem:[%s5 + $0x178] sm:$0xff]
  %v1167 = vld [vmem:[%s5 + $0x180] sm:$0xff]
  %v1168 = vld [vmem:[%s5 + $0x188] sm:$0xff]
  %v1169 = vld [vmem:[%s5 + $0x190] sm:$0xff]
  %v1170 = vld [vmem:[%s5 + $0x198] sm:$0xff]
  %v1171 = vld [vmem:[%s5 + $0x1a0] sm:$0xff]
  %v1172 = vld [vmem:[%s5 + $0x1a8] sm:$0xff]
  %v1173 = vld [vmem:[%s5 + $0x1b0] sm:$0xff]
  %v1174 = vld [vmem:[%s5 + $0x1b8] sm:$0xff]
  %v1175 = vld [vmem:[%s5 + $0x1c0] sm:$0xff]
  %v1176 = vld [vmem:[%s5 + $0x1c8] sm:$0xff]
  %v1177 = vld [vmem:[%s5 + $0x1d0] sm:$0xff]
  %v1178 = vld [vmem:[%s5 + $0x1d8] sm:$0xff]
  %v1179 = vld [vmem:[%s5 + $0x1e0] sm:$0xff]
  %v1180 = vld [vmem:[%s5 + $0x1e8] sm:$0xff]
  %v1181 = vld [vmem:[%s5 + $0x1f0] sm:$0xff]
  %v1182 = vld [vmem:[%s5 + $0x1f8] sm:$0xff]
  %v1183 = vld [vmem:[%s6] sm:$0x1]
  %v1185 = vperm.slane %v1183, 0
  %1187 = vmatpush.msra.mxu0 %v1134
  %1188 = vmatpush.msra.mxu0 %v1133
  %1189 = vmatpush.msra.mxu0 %v1132
  %1190 = vmatpush.msra.mxu0 %v1131
  %1191 = vmatpush.msra.mxu0 %v1130
  %1192 = vmatpush.msra.mxu0 %v1129
  %1193 = vmatpush.msra.mxu0 %v1128
  %1194 = vmatpush.msra.mxu0 %v1127
  %1195 = vmatpush.msra.mxu0 %v1126
  %1196 = vmatpush.msra.mxu0 %v1125
  %1197 = vmatpush.msra.mxu0 %v1124
  %1198 = vmatpush.msra.mxu0 %v1123
  %1199 = vmatpush.msra.mxu0 %v1122
  %1200 = vmatpush.msra.mxu0 %v1121
  %1201 = vmatpush.msra.mxu0 %v1120
  %1202 = vmatpush.msra.mxu0 %v1119
  %1203 = vmatmul.f32.gmra.mxu0 %v1115
  %v1204 = vpop.f32.mrf.mxu0
  %v1205 = vadd.f32 %v1185, %v1204
  %1206 = vdwg.mxu0
  %1207 = vmatpush.msra.mxu0 %v1150
  %1208 = vmatpush.msra.mxu0 %v1149
  %1209 = vmatpush.msra.mxu0 %v1148
  %1210 = vmatpush.msra.mxu0 %v1147
  %1211 = vmatpush.msra.mxu0 %v1146
  %1212 = vmatpush.msra.mxu0 %v1145
  %1213 = vmatpush.msra.mxu0 %v1144
  %1214 = vmatpush.msra.mxu0 %v1143
  %1215 = vmatpush.msra.mxu0 %v1142
  %1216 = vmatpush.msra.mxu0 %v1141
  %1217 = vmatpush.msra.mxu0 %v1140
  %1218 = vmatpush.msra.mxu0 %v1139
  %1219 = vmatpush.msra.mxu0 %v1138
  %1220 = vmatpush.msra.mxu0 %v1137
  %1221 = vmatpush.msra.mxu0 %v1136
  %1222 = vmatpush.msra.mxu0 %v1135
  %1223 = vmatmul.f32.gmra.mxu0 %v1116
  %v1224 = vpop.f32.mrf.mxu0
  %v1225 = vadd.f32 %v1205, %v1224
  %1226 = vdwg.mxu0
  %1227 = vmatpush.msra.mxu0 %v1166
  %1228 = vmatpush.msra.mxu0 %v1165
  %1229 = vmatpush.msra.mxu0 %v1164
  %1230 = vmatpush.msra.mxu0 %v1163
  %1231 = vmatpush.msra.mxu0 %v1162
  %1232 = vmatpush.msra.mxu0 %v1161
  %1233 = vmatpush.msra.mxu0 %v1160
  %1234 = vmatpush.msra.mxu0 %v1159
  %1235 = vmatpush.msra.mxu0 %v1158
  %1236 = vmatpush.msra.mxu0 %v1157
  %1237 = vmatpush.msra.mxu0 %v1156
  %1238 = vmatpush.msra.mxu0 %v1155
  %1239 = vmatpush.msra.mxu0 %v1154
  %1240 = vmatpush.msra.mxu0 %v1153
  %1241 = vmatpush.msra.mxu0 %v1152
  %1242 = vmatpush.msra.mxu0 %v1151
  %1243 = vmatmul.f32.gmra.mxu0 %v1117
  %v1244 = vpop.f32.mrf.mxu0
  %v1245 = vadd.f32 %v1225, %v1244
  %1246 = vdwg.mxu0
  %1247 = vmatpush.msra.mxu0 %v1182
  %1248 = vmatpush.msra.mxu0 %v1181
  %1249 = vmatpush.msra.mxu0 %v1180
  %1250 = vmatpush.msra.mxu0 %v1179
  %1251 = vmatpush.msra.mxu0 %v1178
  %1252 = vmatpush.msra.mxu0 %v1177
  %1253 = vmatpush.msra.mxu0 %v1176
  %1254 = vmatpush.msra.mxu0 %v1175
  %1255 = vmatpush.msra.mxu0 %v1174
  %1256 = vmatpush.msra.mxu0 %v1173
  %1257 = vmatpush.msra.mxu0 %v1172
  %1258 = vmatpush.msra.mxu0 %v1171
  %1259 = vmatpush.msra.mxu0 %v1170
  %1260 = vmatpush.msra.mxu0 %v1169
  %1261 = vmatpush.msra.mxu0 %v1168
  %1262 = vmatpush.msra.mxu0 %v1167
  %1263 = vmatmul.f32.gmra.mxu0 %v1118
  %v1264 = vpop.f32.mrf.mxu0
  %v1265 = vadd.f32 %v1245, %v1264
  %1266 = vdwg.mxu0
  %1267 = vst [vmem:[%s7] sm:$0xff] %v1265
  // Predicated region
  $region30: #{mlp_pallas.1} parent=0 // pred_check
    _
  $region31: #{mlp_pallas.1} parent=0 // pred_check_branch
    %1269 = sbr.rel (0) target = $region33
  $region32: #{mlp_pallas.1} parent=0 // pred_region
    _
  $region33: #{mlp_pallas.1} parent=0 // pred_fallthru
    _
  // Predicated region
  $region34: #{mlp_pallas.1} parent=0 // pred_check
    _
  $region35: #{mlp_pallas.1} parent=0 // pred_check_branch
    %1271 = sbr.rel (0) target = $region37
  $region36: #{mlp_pallas.1} parent=0 // pred_region
    _
  $region37: #{mlp_pallas.1} parent=0 // pred_fallthru
    _

</llo_original>
